<compile_context>
chip_gen: v7x
topology: tpu7x:2x2x1
jax: 0.10.0
libtpu: 0.0.40
codegen_flags: <defaults>
</compile_context>

<pallas_src>
import functools

import jax
import jax.numpy as jnp
from jax import lax
from jax.experimental import pallas as pl
from jax.experimental.pallas import tpu as pltpu


# ---------------------------------------------------------------------------
# Fused kernel: both gated convolutions + BatchNorm + ReLU, whole batch.
# ---------------------------------------------------------------------------
def _fused_kernel(x_ref, w1_ref, b1_ref, g1_ref, bt1_ref,
                  w2_ref, b2_ref, g2_ref, bt2_ref, fold_ref,
                  out_ref, x1p_ref, x2p_ref, *, nhw):
    """x_ref:    (N, H, W*Cin)          bf16  lane-dense NHWC-flattened input
       w?_ref:   (3, K, 2*W*Cout)       bf16  banded conv weights (no W halo)
       b?_ref:   (1, 2*W*Cout)          f32   bias rows, cols = [feature | gate]
       g?/bt?:   (1, W*Cout)            f32   BN gamma / beta tiled over W
       fold_ref: (W*Cout, W*Cout)       f32   block-diag fold matrix (sum over W)
       out_ref:  (N, H, W*Cout)         f32
       x?p_ref:  (N*(H+2), K)           bf16  VMEM scratch: H-zero-padded stacks
    """
    N, H, _ = x_ref.shape
    WC = out_ref.shape[2]
    Hp = H + 2
    M = N * Hp - 2          # stacked-matmul rows: N*H valid + 2*(N-1) junk rows
    eps = 1e-5

    # Rows whose conv output is real (junk rows straddle image boundaries).
    row = lax.broadcasted_iota(jnp.int32, (M, 1), 0)
    valid = (row % Hp) < H

    def gated_conv_bn_relu(xp_ref, w_ref, b_ref, g_ref, bt_ref):
        # 3x3 conv as 3 banded MXU matmuls over the whole batch stack.
        acc = jnp.dot(xp_ref[0:M, :], w_ref[0],
                      preferred_element_type=jnp.float32)
        acc = acc + jnp.dot(xp_ref[1:M + 1, :], w_ref[1],
                            preferred_element_type=jnp.float32)
        acc = acc + jnp.dot(xp_ref[2:M + 2, :], w_ref[2],
                            preferred_element_type=jnp.float32)
        z = acc + b_ref[...]                                    # (M, 2*WC) f32
        gated = z[:, :WC] * jax.nn.sigmoid(z[:, WC:])           # (M, WC)   f32

        # Two-phase BatchNorm entirely in-kernel: mask junk rows, reduce over
        # rows, then fold the W sub-axis of the lane dimension with one tiny
        # f32 matmul -> per-channel stats already broadcast over the W lanes.
        gm = jnp.where(valid, gated, 0.0)
        sums = jnp.concatenate([jnp.sum(gm, axis=0, keepdims=True),
                                jnp.sum(gm * gm, axis=0, keepdims=True)],
                               axis=0)                          # (2, WC)
        folded = jnp.dot(sums, fold_ref[...],
                         preferred_element_type=jnp.float32)    # (2, WC)
        mean = folded[0:1] / nhw
        var = jnp.maximum(folded[1:2] / nhw - mean * mean, 0.0)  # biased var
        scale = g_ref[...] * lax.rsqrt(var + eps)
        shift = bt_ref[...] - mean * scale
        return jnp.maximum(gated * scale + shift, 0.0)          # (M, WC) f32

    # ---- layer 1: build the H-zero-padded batch stack in VMEM --------------
    x1p_ref[...] = jnp.zeros(x1p_ref.shape, x1p_ref.dtype)
    for n in range(N):                                          # static unroll
        x1p_ref[n * Hp + 1:n * Hp + 1 + H, :] = x_ref[n]
    y1 = gated_conv_bn_relu(x1p_ref, w1_ref, b1_ref, g1_ref, bt1_ref)

    # ---- layer 2: interior writes only; zero border rows stay zero ---------
    x2p_ref[...] = jnp.zeros(x2p_ref.shape, x2p_ref.dtype)
    for n in range(N):
        x2p_ref[n * Hp + 1:n * Hp + 1 + H, :] = (
            y1[n * Hp:n * Hp + H].astype(x2p_ref.dtype))
    y2 = gated_conv_bn_relu(x2p_ref, w2_ref, b2_ref, g2_ref, bt2_ref)

    # ---- output: copy only the valid rows of each image --------------------
    for n in range(N):
        out_ref[n, :, :] = y2[n * Hp:n * Hp + H]


# ---------------------------------------------------------------------------
# Host-side parameter prep (runs once, outside the jitted forward)
# ---------------------------------------------------------------------------
def _build_banded_weights(w_hwio, bias, W):
    """Conv-as-matmul banded weights WITHOUT a W halo.

    w_hwio: (3, 3, Cin, 2*Cout) f32, output channels ordered [feature | gate].
    Returns
      wmat: (3, W*Cin, 2*W*Cout) bf16; rows = w_in*Cin + c,
            cols = half*W*Cout + w_out*Cout + o, entry = w[dy, w_in-w_out+1, c, ...]
            (taps falling outside [0, W) are dropped -> zero padding in W).
      brow: (1, 2*W*Cout) f32 bias in the same column layout.
    """
    _, _, Cin, C2 = w_hwio.shape
    Cout = C2 // 2
    # P[dx, w_out, w_in] = 1 iff w_in == w_out + dx - 1
    P = (jnp.arange(W)[None, None, :]
         == (jnp.arange(W)[None, :, None] + jnp.arange(3)[:, None, None] - 1))
    P = P.astype(jnp.float32)
    w6 = w_hwio.reshape(3, 3, Cin, 2, Cout)                     # (dy,dx,c,half,o)
    R = jnp.einsum('xqw,yxcho->ywchqo', P, w6)                  # (dy,w_in,c,half,w_out,o)
    wmat = R.reshape(3, W * Cin, 2 * W * Cout).astype(jnp.bfloat16)
    brow = jnp.tile(bias.reshape(2, 1, Cout), (1, W, 1)).reshape(1, 2 * W * Cout)
    return wmat, brow.astype(jnp.float32)


def prepare_params(params, W):
    """One-time prep: banded weights, bias rows, tiled BN params, fold matrix."""
    prep = {}
    for i, p in enumerate(params, start=1):
        wmat, brow = _build_banded_weights(p["w"], p["b"], W)
        prep[f"w{i}"] = wmat
        prep[f"b{i}"] = brow
        prep[f"g{i}"] = jnp.tile(p["gamma"].astype(jnp.float32), W)[None, :]
        prep[f"bt{i}"] = jnp.tile(p["beta"].astype(jnp.float32), W)[None, :]
    Cout = params[-1]["gamma"].shape[0]
    prep["fold"] = jnp.tile(jnp.eye(Cout, dtype=jnp.float32), (W, W))
    return prep


# ---------------------------------------------------------------------------
# Forward wrapper
# ---------------------------------------------------------------------------
@jax.jit
def gated_double_conv(x_nchw, prep):
    """GatedDoubleConv forward.  x_nchw: (N, Cin, H, W) like PyTorch."""
    N, Cin, H, W = x_nchw.shape
    WC = prep["g2"].shape[1]
    Cout = WC // W

    # NCHW -> lane-dense flattened (N, H, W*Cin), bf16. No W halo, no H pad
    # here: H zero rows are written in-kernel into the VMEM stack scratch.
    x = jnp.transpose(x_nchw, (0, 2, 3, 1)).reshape(N, H, W * Cin)
    x = x.astype(jnp.bfloat16)

    vmem_full = pl.BlockSpec(memory_space=pltpu.MemorySpace.VMEM)
    out = pl.pallas_call(
        functools.partial(_fused_kernel, nhw=float(N * H * W)),
        out_shape=jax.ShapeDtypeStruct((N, H, WC), jnp.float32),
        in_specs=[vmem_full] * 10,
        out_specs=vmem_full,
        scratch_shapes=[pltpu.VMEM((N * (H + 2), W * Cin), jnp.bfloat16),
                        pltpu.VMEM((N * (H + 2), WC), jnp.bfloat16)],
    )(x, prep["w1"], prep["b1"], prep["g1"], prep["bt1"],
      prep["w2"], prep["b2"], prep["g2"], prep["bt2"], prep["fold"])

    # (N, H, W*Cout) -> NCHW
    return jnp.transpose(out.reshape(N, H, W, Cout), (0, 3, 1, 2))


def make_params(key, in_channels, out_channels):
    """Deterministic synthetic parameters for the two gated convolutions."""
    params = []
    cin = in_channels
    for _ in range(2):
        key, kw, kb = jax.random.split(key, 3)
        fan_in = 9 * cin
        w = jax.random.normal(kw, (3, 3, cin, 2 * out_channels),
                              jnp.float32) / jnp.sqrt(float(fan_in))
        b = jax.random.normal(kb, (2 * out_channels,), jnp.float32) * 0.1
        params.append(dict(
            w=w, b=b,
            gamma=jnp.ones((out_channels,), jnp.float32),   # fresh BatchNorm2d
            beta=jnp.zeros((out_channels,), jnp.float32),
        ))
        cin = out_channels
    return params


# ---------------------------------------------------------------------------
# Pure-JAX reference (XLA conv) at matched (bf16-input, f32-accumulate) precision
# ---------------------------------------------------------------------------
def _ref_gated_double_conv(x_nchw, params):
    x = jnp.transpose(x_nchw, (0, 2, 3, 1))
    for p in params:
        Cout = p["gamma"].shape[0]
        xin = x.astype(jnp.bfloat16).astype(jnp.float32)
        w = p["w"].astype(jnp.bfloat16).astype(jnp.float32)
        z = lax.conv_general_dilated(
            xin, w, (1, 1), "SAME",
            dimension_numbers=("NHWC", "HWIO", "NHWC")) + p["b"][None, None, None, :]
        a, g = z[..., :Cout], z[..., Cout:]
        h = a * jax.nn.sigmoid(g)
        mean = jnp.mean(h, axis=(0, 1, 2), keepdims=True)
        var = jnp.mean(jnp.square(h - mean), axis=(0, 1, 2), keepdims=True)
        h = (h - mean) * lax.rsqrt(var + 1e-5)
        h = h * p["gamma"][None, None, None, :] + p["beta"][None, None, None, :]
        x = jnp.maximum(h, 0.0)
    return jnp.transpose(x, (0, 3, 1, 2))


if __name__ == "__main__":
    key = jax.random.PRNGKey(0)
    key, kx = jax.random.split(key)

    N, Cin, Cout, H, W = 2, 4, 8, 16, 16
    x = jax.random.normal(kx, (N, Cin, H, W), jnp.float32)
    params = make_params(key, Cin, Cout)
    prep = prepare_params(params, W)     # one-time host-side parameter prep

    out = jax.block_until_ready(gated_double_conv(x, prep))
    ref = jax.block_until_ready(_ref_gated_double_conv(x, params))

    assert out.shape == (N, Cout, H, W), out.shape
    # bf16 activations/weights feed the MXU (accumulation/BN in f32); the
    # inter-layer bf16 rounding gives ~1e-3 max error vs the matched reference.
    max_err = float(jnp.max(jnp.abs(out - ref)))
    assert jnp.allclose(out, ref, atol=1e-2, rtol=1e-2), max_err
    print("KERNEL_OK")
</pallas_src>

<mosaic_0001>
module attributes {stable_mosaic.version = 11 : i64} {
  func.func @_fused_kernel(%arg0: memref<2x16x64xbf16, #tpu.memory_space<vmem>>, %arg1: memref<3x64x256xbf16, #tpu.memory_space<vmem>>, %arg2: memref<1x256xf32, #tpu.memory_space<vmem>>, %arg3: memref<1x128xf32, #tpu.memory_space<vmem>>, %arg4: memref<1x128xf32, #tpu.memory_space<vmem>>, %arg5: memref<3x128x256xbf16, #tpu.memory_space<vmem>>, %arg6: memref<1x256xf32, #tpu.memory_space<vmem>>, %arg7: memref<1x128xf32, #tpu.memory_space<vmem>>, %arg8: memref<1x128xf32, #tpu.memory_space<vmem>>, %arg9: memref<128x128xf32, #tpu.memory_space<vmem>>, %arg10: memref<2x16x128xf32, #tpu.memory_space<vmem>>, %arg11: memref<36x64xbf16, #tpu.memory_space<vmem>>, %arg12: memref<36x128xbf16, #tpu.memory_space<vmem>>) attributes {dimension_semantics = [], scalar_prefetch = 0 : i64, scratch_operands = 2 : i64, tpu.core_type = #tpu.core_type<tc>} {
    %0 = tpu.iota {dimensions = array<i32: 0>} : vector<34x1xi32>
    %c18_i32 = arith.constant 18 : i32
    %c0_i32 = arith.constant 0 : i32
    %1 = arith.cmpi eq, %c18_i32, %c0_i32 : i32
    %c1_i32 = arith.constant 1 : i32
    %2 = arith.select %1, %c1_i32, %c18_i32 : i32
    %3 = vector.broadcast %2 : i32 to vector<34x1xi32>
    %4 = arith.remsi %0, %3 : vector<34x1xi32>
    %c0_i32_0 = arith.constant 0 : i32
    %5 = vector.broadcast %c0_i32_0 : i32 to vector<34x1xi32>
    %6 = arith.cmpi ne, %4, %5 : vector<34x1xi32>
    %c0_i32_1 = arith.constant 0 : i32
    %7 = vector.broadcast %c0_i32_1 : i32 to vector<34x1xi32>
    %8 = arith.cmpi slt, %4, %7 : vector<34x1xi32>
    %c0_i32_2 = arith.constant 0 : i32
    %9 = arith.cmpi slt, %2, %c0_i32_2 : i32
    %10 = vector.broadcast %9 : i1 to vector<34x1xi1>
    %11 = vector.broadcast %10 : vector<34x1xi1> to vector<34x1xi1>
    %12 = arith.xori %8, %11 : vector<34x1xi1>
    %13 = arith.andi %12, %6 : vector<34x1xi1>
    %14 = vector.broadcast %2 : i32 to vector<34x1xi32>
    %15 = arith.addi %4, %14 : vector<34x1xi32>
    %16 = arith.select %13, %15, %4 : vector<34x1xi1>, vector<34x1xi32>
    %c16_i32 = arith.constant 16 : i32
    %17 = vector.broadcast %c16_i32 : i32 to vector<34x1xi32>
    %18 = arith.cmpi slt, %16, %17 : vector<34x1xi32>
    %cst = arith.constant 0.000000e+00 : bf16
    %19 = vector.broadcast %cst : bf16 to vector<36x64xbf16>
    %c0 = arith.constant 0 : index
    %c0_3 = arith.constant 0 : index
    %20 = vector.load %arg11[%c0, %c0_3] : memref<36x64xbf16, #tpu.memory_space<vmem>>, vector<36x64xbf16>
    tpu.vector_store %arg11[%c0, %c0_3], %19 {strides = array<i32>} : memref<36x64xbf16, #tpu.memory_space<vmem>>, vector<36x64xbf16>,
    %c0_4 = arith.constant 0 : index
    %c0_5 = arith.constant 0 : index
    %c0_6 = arith.constant 0 : index
    %21 = vector.load %arg0[%c0_4, %c0_5, %c0_6] : memref<2x16x64xbf16, #tpu.memory_space<vmem>>, vector<1x16x64xbf16>
    %22 = vector.shape_cast %21 : vector<1x16x64xbf16> to vector<16x64xbf16>
    %c1 = arith.constant 1 : index
    %c0_7 = arith.constant 0 : index
    %23 = vector.load %arg11[%c1, %c0_7] : memref<36x64xbf16, #tpu.memory_space<vmem>>, vector<16x64xbf16>
    tpu.vector_store %arg11[%c1, %c0_7], %22 {strides = array<i32>} : memref<36x64xbf16, #tpu.memory_space<vmem>>, vector<16x64xbf16>,
    %c1_8 = arith.constant 1 : index
    %c0_9 = arith.constant 0 : index
    %c0_10 = arith.constant 0 : index
    %24 = vector.load %arg0[%c1_8, %c0_9, %c0_10] : memref<2x16x64xbf16, #tpu.memory_space<vmem>>, vector<1x16x64xbf16>
    %25 = vector.shape_cast %24 : vector<1x16x64xbf16> to vector<16x64xbf16>
    %c19 = arith.constant 19 : index
    %c0_11 = arith.constant 0 : index
    %26 = vector.load %arg11[%c19, %c0_11] : memref<36x64xbf16, #tpu.memory_space<vmem>>, vector<16x64xbf16>
    tpu.vector_store %arg11[%c19, %c0_11], %25 {strides = array<i32>} : memref<36x64xbf16, #tpu.memory_space<vmem>>, vector<16x64xbf16>,
    %c0_12 = arith.constant 0 : index
    %c0_13 = arith.constant 0 : index
    %27 = vector.load %arg11[%c0_12, %c0_13] : memref<36x64xbf16, #tpu.memory_space<vmem>>, vector<34x64xbf16>
    %c0_14 = arith.constant 0 : index
    %c0_15 = arith.constant 0 : index
    %c0_16 = arith.constant 0 : index
    %28 = vector.load %arg1[%c0_14, %c0_15, %c0_16] : memref<3x64x256xbf16, #tpu.memory_space<vmem>>, vector<1x64x256xbf16>
    %29 = vector.shape_cast %28 : vector<1x64x256xbf16> to vector<64x256xbf16>
    %cst_17 = arith.constant dense<0.000000e+00> : vector<34x256xf32>
    %30 = tpu.matmul %27, %29, %cst_17 {dimension_numbers = #tpu.dot_dimension_numbers<[1], [0], [0], [1], [0, 0, 1, 1], [], []>} : vector<34x64xbf16>, vector<64x256xbf16>, vector<34x256xf32> -> vector<34x256xf32>
    %c1_18 = arith.constant 1 : index
    %c0_19 = arith.constant 0 : index
    %31 = vector.load %arg11[%c1_18, %c0_19] : memref<36x64xbf16, #tpu.memory_space<vmem>>, vector<34x64xbf16>
    %c1_20 = arith.constant 1 : index
    %c0_21 = arith.constant 0 : index
    %c0_22 = arith.constant 0 : index
    %32 = vector.load %arg1[%c1_20, %c0_21, %c0_22] : memref<3x64x256xbf16, #tpu.memory_space<vmem>>, vector<1x64x256xbf16>
    %33 = vector.shape_cast %32 : vector<1x64x256xbf16> to vector<64x256xbf16>
    %cst_23 = arith.constant dense<0.000000e+00> : vector<34x256xf32>
    %34 = tpu.matmul %31, %33, %cst_23 {dimension_numbers = #tpu.dot_dimension_numbers<[1], [0], [0], [1], [0, 0, 1, 1], [], []>} : vector<34x64xbf16>, vector<64x256xbf16>, vector<34x256xf32> -> vector<34x256xf32>
    %35 = arith.addf %30, %34 : vector<34x256xf32>
    %c2 = arith.constant 2 : index
    %c0_24 = arith.constant 0 : index
    %36 = vector.load %arg11[%c2, %c0_24] : memref<36x64xbf16, #tpu.memory_space<vmem>>, vector<34x64xbf16>
    %c2_25 = arith.constant 2 : index
    %c0_26 = arith.constant 0 : index
    %c0_27 = arith.constant 0 : index
    %37 = vector.load %arg1[%c2_25, %c0_26, %c0_27] : memref<3x64x256xbf16, #tpu.memory_space<vmem>>, vector<1x64x256xbf16>
    %38 = vector.shape_cast %37 : vector<1x64x256xbf16> to vector<64x256xbf16>
    %cst_28 = arith.constant dense<0.000000e+00> : vector<34x256xf32>
    %39 = tpu.matmul %36, %38, %cst_28 {dimension_numbers = #tpu.dot_dimension_numbers<[1], [0], [0], [1], [0, 0, 1, 1], [], []>} : vector<34x64xbf16>, vector<64x256xbf16>, vector<34x256xf32> -> vector<34x256xf32>
    %40 = arith.addf %35, %39 : vector<34x256xf32>
    %c0_29 = arith.constant 0 : index
    %c0_30 = arith.constant 0 : index
    %41 = vector.load %arg2[%c0_29, %c0_30] : memref<1x256xf32, #tpu.memory_space<vmem>>, vector<1x256xf32>
    %42 = vector.broadcast %41 : vector<1x256xf32> to vector<34x256xf32>
    %43 = arith.addf %40, %42 : vector<34x256xf32>
    %44 = vector.extract_strided_slice %43 {offsets = [0, 0], sizes = [34, 128], strides = [1, 1]} : vector<34x256xf32> to vector<34x128xf32>
    %45 = vector.extract_strided_slice %43 {offsets = [0, 128], sizes = [34, 128], strides = [1, 1]} : vector<34x256xf32> to vector<34x128xf32>
    %46 = arith.negf %45 : vector<34x128xf32>
    %47 = math.exp %46 : vector<34x128xf32>
    %cst_31 = arith.constant 1.000000e+00 : f32
    %48 = vector.broadcast %cst_31 : f32 to vector<34x128xf32>
    %49 = arith.addf %48, %47 : vector<34x128xf32>
    %50 = arith.divf %48, %49 : vector<34x128xf32>
    %51 = arith.mulf %44, %50 : vector<34x128xf32>
    %cst_32 = arith.constant 0.000000e+00 : f32
    %52 = vector.shape_cast %18 : vector<34x1xi1> to vector<34x1xi1>
    %53 = vector.broadcast %52 : vector<34x1xi1> to vector<34x128xi1>
    %54 = vector.broadcast %cst_32 : f32 to vector<34x128xf32>
    %55 = arith.select %53, %51, %54 : vector<34x128xi1>, vector<34x128xf32>
    %cst_33 = arith.constant dense<0.000000e+00> : vector<128xf32>
    %56 = vector.multi_reduction <add>, %55, %cst_33 [0] : vector<34x128xf32> to vector<128xf32>
    %57 = vector.shape_cast %56 : vector<128xf32> to vector<1x128xf32>
    %58 = arith.mulf %55, %55 : vector<34x128xf32>
    %cst_34 = arith.constant dense<0.000000e+00> : vector<128xf32>
    %59 = vector.multi_reduction <add>, %58, %cst_34 [0] : vector<34x128xf32> to vector<128xf32>
    %60 = vector.shape_cast %59 : vector<128xf32> to vector<1x128xf32>
    %61 = tpu.concatenate %57, %60 in 0 : vector<1x128xf32>, vector<1x128xf32> -> vector<2x128xf32>
    %c0_35 = arith.constant 0 : index
    %c0_36 = arith.constant 0 : index
    %62 = vector.load %arg9[%c0_35, %c0_36] : memref<128x128xf32, #tpu.memory_space<vmem>>, vector<128x128xf32>
    %cst_37 = arith.constant dense<0.000000e+00> : vector<2x128xf32>
    %63 = tpu.matmul %61, %62, %cst_37 {dimension_numbers = #tpu.dot_dimension_numbers<[1], [0], [0], [1], [0, 0, 1, 1], [], []>} : vector<2x128xf32>, vector<128x128xf32>, vector<2x128xf32> -> vector<2x128xf32>
    %64 = vector.extract_strided_slice %63 {offsets = [0, 0], sizes = [1, 128], strides = [1, 1]} : vector<2x128xf32> to vector<1x128xf32>
    %cst_38 = arith.constant 5.120000e+02 : f32
    %65 = vector.broadcast %cst_38 : f32 to vector<1x128xf32>
    %66 = arith.divf %64, %65 : vector<1x128xf32>
    %67 = vector.extract_strided_slice %63 {offsets = [1, 0], sizes = [1, 128], strides = [1, 1]} : vector<2x128xf32> to vector<1x128xf32>
    %cst_39 = arith.constant 5.120000e+02 : f32
    %68 = vector.broadcast %cst_39 : f32 to vector<1x128xf32>
    %69 = arith.divf %67, %68 : vector<1x128xf32>
    %70 = arith.mulf %66, %66 : vector<1x128xf32>
    %71 = arith.subf %69, %70 : vector<1x128xf32>
    %cst_40 = arith.constant 0.000000e+00 : f32
    %72 = vector.broadcast %cst_40 : f32 to vector<1x128xf32>
    %73 = arith.maximumf %71, %72 : vector<1x128xf32>
    %c0_41 = arith.constant 0 : index
    %c0_42 = arith.constant 0 : index
    %74 = vector.load %arg3[%c0_41, %c0_42] : memref<1x128xf32, #tpu.memory_space<vmem>>, vector<1x128xf32>
    %cst_43 = arith.constant 9.99999974E-6 : f32
    %75 = vector.broadcast %cst_43 : f32 to vector<1x128xf32>
    %76 = arith.addf %73, %75 : vector<1x128xf32>
    %77 = math.rsqrt %76 : vector<1x128xf32>
    %78 = arith.mulf %74, %77 : vector<1x128xf32>
    %c0_44 = arith.constant 0 : index
    %c0_45 = arith.constant 0 : index
    %79 = vector.load %arg4[%c0_44, %c0_45] : memref<1x128xf32, #tpu.memory_space<vmem>>, vector<1x128xf32>
    %80 = arith.mulf %66, %78 : vector<1x128xf32>
    %81 = arith.subf %79, %80 : vector<1x128xf32>
    %82 = vector.broadcast %78 : vector<1x128xf32> to vector<34x128xf32>
    %83 = arith.mulf %51, %82 : vector<34x128xf32>
    %84 = vector.broadcast %81 : vector<1x128xf32> to vector<34x128xf32>
    %85 = arith.addf %83, %84 : vector<34x128xf32>
    %cst_46 = arith.constant 0.000000e+00 : f32
    %86 = vector.broadcast %cst_46 : f32 to vector<34x128xf32>
    %87 = arith.maximumf %85, %86 : vector<34x128xf32>
    %cst_47 = arith.constant 0.000000e+00 : bf16
    %88 = vector.broadcast %cst_47 : bf16 to vector<36x128xbf16>
    %c0_48 = arith.constant 0 : index
    %c0_49 = arith.constant 0 : index
    %89 = vector.load %arg12[%c0_48, %c0_49] : memref<36x128xbf16, #tpu.memory_space<vmem>>, vector<36x128xbf16>
    tpu.vector_store %arg12[%c0_48, %c0_49], %88 {strides = array<i32>} : memref<36x128xbf16, #tpu.memory_space<vmem>>, vector<36x128xbf16>,
    %90 = vector.extract_strided_slice %87 {offsets = [0, 0], sizes = [16, 128], strides = [1, 1]} : vector<34x128xf32> to vector<16x128xf32>
    %91 = arith.truncf %90 : vector<16x128xf32> to vector<16x128xbf16>
    %c1_50 = arith.constant 1 : index
    %c0_51 = arith.constant 0 : index
    %92 = vector.load %arg12[%c1_50, %c0_51] : memref<36x128xbf16, #tpu.memory_space<vmem>>, vector<16x128xbf16>
    tpu.vector_store %arg12[%c1_50, %c0_51], %91 {strides = array<i32>} : memref<36x128xbf16, #tpu.memory_space<vmem>>, vector<16x128xbf16>,
    %93 = vector.extract_strided_slice %87 {offsets = [18, 0], sizes = [16, 128], strides = [1, 1]} : vector<34x128xf32> to vector<16x128xf32>
    %94 = arith.truncf %93 : vector<16x128xf32> to vector<16x128xbf16>
    %c19_52 = arith.constant 19 : index
    %c0_53 = arith.constant 0 : index
    %95 = vector.load %arg12[%c19_52, %c0_53] : memref<36x128xbf16, #tpu.memory_space<vmem>>, vector<16x128xbf16>
    tpu.vector_store %arg12[%c19_52, %c0_53], %94 {strides = array<i32>} : memref<36x128xbf16, #tpu.memory_space<vmem>>, vector<16x128xbf16>,
    %c0_54 = arith.constant 0 : index
    %c0_55 = arith.constant 0 : index
    %96 = vector.load %arg12[%c0_54, %c0_55] : memref<36x128xbf16, #tpu.memory_space<vmem>>, vector<34x128xbf16>
    %c0_56 = arith.constant 0 : index
    %c0_57 = arith.constant 0 : index
    %c0_58 = arith.constant 0 : index
    %97 = vector.load %arg5[%c0_56, %c0_57, %c0_58] : memref<3x128x256xbf16, #tpu.memory_space<vmem>>, vector<1x128x256xbf16>
    %98 = vector.shape_cast %97 : vector<1x128x256xbf16> to vector<128x256xbf16>
    %cst_59 = arith.constant dense<0.000000e+00> : vector<34x256xf32>
    %99 = tpu.matmul %96, %98, %cst_59 {dimension_numbers = #tpu.dot_dimension_numbers<[1], [0], [0], [1], [0, 0, 1, 1], [], []>} : vector<34x128xbf16>, vector<128x256xbf16>, vector<34x256xf32> -> vector<34x256xf32>
    %c1_60 = arith.constant 1 : index
    %c0_61 = arith.constant 0 : index
    %100 = vector.load %arg12[%c1_60, %c0_61] : memref<36x128xbf16, #tpu.memory_space<vmem>>, vector<34x128xbf16>
    %c1_62 = arith.constant 1 : index
    %c0_63 = arith.constant 0 : index
    %c0_64 = arith.constant 0 : index
    %101 = vector.load %arg5[%c1_62, %c0_63, %c0_64] : memref<3x128x256xbf16, #tpu.memory_space<vmem>>, vector<1x128x256xbf16>
    %102 = vector.shape_cast %101 : vector<1x128x256xbf16> to vector<128x256xbf16>
    %cst_65 = arith.constant dense<0.000000e+00> : vector<34x256xf32>
    %103 = tpu.matmul %100, %102, %cst_65 {dimension_numbers = #tpu.dot_dimension_numbers<[1], [0], [0], [1], [0, 0, 1, 1], [], []>} : vector<34x128xbf16>, vector<128x256xbf16>, vector<34x256xf32> -> vector<34x256xf32>
    %104 = arith.addf %99, %103 : vector<34x256xf32>
    %c2_66 = arith.constant 2 : index
    %c0_67 = arith.constant 0 : index
    %105 = vector.load %arg12[%c2_66, %c0_67] : memref<36x128xbf16, #tpu.memory_space<vmem>>, vector<34x128xbf16>
    %c2_68 = arith.constant 2 : index
    %c0_69 = arith.constant 0 : index
    %c0_70 = arith.constant 0 : index
    %106 = vector.load %arg5[%c2_68, %c0_69, %c0_70] : memref<3x128x256xbf16, #tpu.memory_space<vmem>>, vector<1x128x256xbf16>
    %107 = vector.shape_cast %106 : vector<1x128x256xbf16> to vector<128x256xbf16>
    %cst_71 = arith.constant dense<0.000000e+00> : vector<34x256xf32>
    %108 = tpu.matmul %105, %107, %cst_71 {dimension_numbers = #tpu.dot_dimension_numbers<[1], [0], [0], [1], [0, 0, 1, 1], [], []>} : vector<34x128xbf16>, vector<128x256xbf16>, vector<34x256xf32> -> vector<34x256xf32>
    %109 = arith.addf %104, %108 : vector<34x256xf32>
    %c0_72 = arith.constant 0 : index
    %c0_73 = arith.constant 0 : index
    %110 = vector.load %arg6[%c0_72, %c0_73] : memref<1x256xf32, #tpu.memory_space<vmem>>, vector<1x256xf32>
    %111 = vector.broadcast %110 : vector<1x256xf32> to vector<34x256xf32>
    %112 = arith.addf %109, %111 : vector<34x256xf32>
    %113 = vector.extract_strided_slice %112 {offsets = [0, 0], sizes = [34, 128], strides = [1, 1]} : vector<34x256xf32> to vector<34x128xf32>
    %114 = vector.extract_strided_slice %112 {offsets = [0, 128], sizes = [34, 128], strides = [1, 1]} : vector<34x256xf32> to vector<34x128xf32>
    %115 = arith.negf %114 : vector<34x128xf32>
    %116 = math.exp %115 : vector<34x128xf32>
    %cst_74 = arith.constant 1.000000e+00 : f32
    %117 = vector.broadcast %cst_74 : f32 to vector<34x128xf32>
    %118 = arith.addf %117, %116 : vector<34x128xf32>
    %119 = arith.divf %117, %118 : vector<34x128xf32>
    %120 = arith.mulf %113, %119 : vector<34x128xf32>
    %cst_75 = arith.constant 0.000000e+00 : f32
    %121 = vector.shape_cast %18 : vector<34x1xi1> to vector<34x1xi1>
    %122 = vector.broadcast %121 : vector<34x1xi1> to vector<34x128xi1>
    %123 = vector.broadcast %cst_75 : f32 to vector<34x128xf32>
    %124 = arith.select %122, %120, %123 : vector<34x128xi1>, vector<34x128xf32>
    %cst_76 = arith.constant dense<0.000000e+00> : vector<128xf32>
    %125 = vector.multi_reduction <add>, %124, %cst_76 [0] : vector<34x128xf32> to vector<128xf32>
    %126 = vector.shape_cast %125 : vector<128xf32> to vector<1x128xf32>
    %127 = arith.mulf %124, %124 : vector<34x128xf32>
    %cst_77 = arith.constant dense<0.000000e+00> : vector<128xf32>
    %128 = vector.multi_reduction <add>, %127, %cst_77 [0] : vector<34x128xf32> to vector<128xf32>
    %129 = vector.shape_cast %128 : vector<128xf32> to vector<1x128xf32>
    %130 = tpu.concatenate %126, %129 in 0 : vector<1x128xf32>, vector<1x128xf32> -> vector<2x128xf32>
    %c0_78 = arith.constant 0 : index
    %c0_79 = arith.constant 0 : index
    %131 = vector.load %arg9[%c0_78, %c0_79] : memref<128x128xf32, #tpu.memory_space<vmem>>, vector<128x128xf32>
    %cst_80 = arith.constant dense<0.000000e+00> : vector<2x128xf32>
    %132 = tpu.matmul %130, %131, %cst_80 {dimension_numbers = #tpu.dot_dimension_numbers<[1], [0], [0], [1], [0, 0, 1, 1], [], []>} : vector<2x128xf32>, vector<128x128xf32>, vector<2x128xf32> -> vector<2x128xf32>
    %133 = vector.extract_strided_slice %132 {offsets = [0, 0], sizes = [1, 128], strides = [1, 1]} : vector<2x128xf32> to vector<1x128xf32>
    %cst_81 = arith.constant 5.120000e+02 : f32
    %134 = vector.broadcast %cst_81 : f32 to vector<1x128xf32>
    %135 = arith.divf %133, %134 : vector<1x128xf32>
    %136 = vector.extract_strided_slice %132 {offsets = [1, 0], sizes = [1, 128], strides = [1, 1]} : vector<2x128xf32> to vector<1x128xf32>
    %cst_82 = arith.constant 5.120000e+02 : f32
    %137 = vector.broadcast %cst_82 : f32 to vector<1x128xf32>
    %138 = arith.divf %136, %137 : vector<1x128xf32>
    %139 = arith.mulf %135, %135 : vector<1x128xf32>
    %140 = arith.subf %138, %139 : vector<1x128xf32>
    %cst_83 = arith.constant 0.000000e+00 : f32
    %141 = vector.broadcast %cst_83 : f32 to vector<1x128xf32>
    %142 = arith.maximumf %140, %141 : vector<1x128xf32>
    %c0_84 = arith.constant 0 : index
    %c0_85 = arith.constant 0 : index
    %143 = vector.load %arg7[%c0_84, %c0_85] : memref<1x128xf32, #tpu.memory_space<vmem>>, vector<1x128xf32>
    %cst_86 = arith.constant 9.99999974E-6 : f32
    %144 = vector.broadcast %cst_86 : f32 to vector<1x128xf32>
    %145 = arith.addf %142, %144 : vector<1x128xf32>
    %146 = math.rsqrt %145 : vector<1x128xf32>
    %147 = arith.mulf %143, %146 : vector<1x128xf32>
    %c0_87 = arith.constant 0 : index
    %c0_88 = arith.constant 0 : index
    %148 = vector.load %arg8[%c0_87, %c0_88] : memref<1x128xf32, #tpu.memory_space<vmem>>, vector<1x128xf32>
    %149 = arith.mulf %135, %147 : vector<1x128xf32>
    %150 = arith.subf %148, %149 : vector<1x128xf32>
    %151 = vector.broadcast %147 : vector<1x128xf32> to vector<34x128xf32>
    %152 = arith.mulf %120, %151 : vector<34x128xf32>
    %153 = vector.broadcast %150 : vector<1x128xf32> to vector<34x128xf32>
    %154 = arith.addf %152, %153 : vector<34x128xf32>
    %cst_89 = arith.constant 0.000000e+00 : f32
    %155 = vector.broadcast %cst_89 : f32 to vector<34x128xf32>
    %156 = arith.maximumf %154, %155 : vector<34x128xf32>
    %157 = vector.extract_strided_slice %156 {offsets = [0, 0], sizes = [16, 128], strides = [1, 1]} : vector<34x128xf32> to vector<16x128xf32>
    %c0_90 = arith.constant 0 : index
    %c0_91 = arith.constant 0 : index
    %c0_92 = arith.constant 0 : index
    %158 = vector.load %arg10[%c0_90, %c0_91, %c0_92] : memref<2x16x128xf32, #tpu.memory_space<vmem>>, vector<1x16x128xf32>
    %159 = vector.shape_cast %158 : vector<1x16x128xf32> to vector<16x128xf32>
    %160 = vector.shape_cast %157 : vector<16x128xf32> to vector<1x16x128xf32>
    tpu.vector_store %arg10[%c0_90, %c0_91, %c0_92], %160 {strides = array<i32>} : memref<2x16x128xf32, #tpu.memory_space<vmem>>, vector<1x16x128xf32>,
    %161 = vector.extract_strided_slice %156 {offsets = [18, 0], sizes = [16, 128], strides = [1, 1]} : vector<34x128xf32> to vector<16x128xf32>
    %c1_93 = arith.constant 1 : index
    %c0_94 = arith.constant 0 : index
    %c0_95 = arith.constant 0 : index
    %162 = vector.load %arg10[%c1_93, %c0_94, %c0_95] : memref<2x16x128xf32, #tpu.memory_space<vmem>>, vector<1x16x128xf32>
    %163 = vector.shape_cast %162 : vector<1x16x128xf32> to vector<16x128xf32>
    %164 = vector.shape_cast %161 : vector<16x128xf32> to vector<1x16x128xf32>
    tpu.vector_store %arg10[%c1_93, %c0_94, %c0_95], %164 {strides = array<i32>} : memref<2x16x128xf32, #tpu.memory_space<vmem>>, vector<1x16x128xf32>,
    return
  }
}

</mosaic_0001>

<llo_original>
// kernel: gated_double_conv.1
$region0: #{gated_double_conv.1}
  #allocation0 [shape = 'u32[]', space=smem, size = 0x4, offset = 0x4, fixed_abs, tag = 'smem constant byte address 0x4 - core index']
  #allocation1 [shape = 'u32[144,128]{1,0:T(1,128)}', space=vmem, size = 0x12000, scoped, tag = 'internal scratch']
  #allocation2 [shape = 'bf16[36,64]{1,0:T(8,128)(2,1)}', space=vmem, size = 0x2800, scoped, tag = 'scratch operand']
  #allocation3 [shape = 'bf16[36,128]{1,0:T(8,128)(2,1)}', space=vmem, size = 0x2800, scoped, tag = 'scratch operand']
  %s0 = inlined_call_operand.vmem [shape: bf16[2,16,64], index: 0, kind: input, shape index: {}]
  %s1 = inlined_call_operand.hbm [shape: bf16[3,64,256], index: 1, kind: input, shape index: {}]
  %s2 = inlined_call_operand.vmem [shape: f32[1,256], index: 2, kind: input, shape index: {}]
  %s3 = inlined_call_operand.vmem [shape: f32[1,128], index: 3, kind: input, shape index: {}]
  %s4 = inlined_call_operand.vmem [shape: f32[1,128], index: 4, kind: input, shape index: {}]
  %s5 = inlined_call_operand.vmem [shape: bf16[3,128,256], index: 5, kind: input, shape index: {}]
  %s6 = inlined_call_operand.vmem [shape: f32[1,256], index: 6, kind: input, shape index: {}]
  %s7 = inlined_call_operand.vmem [shape: f32[1,128], index: 7, kind: input, shape index: {}]
  %s8 = inlined_call_operand.vmem [shape: f32[1,128], index: 8, kind: input, shape index: {}]
  %s9 = inlined_call_operand.hbm [shape: f32[128,128], index: 9, kind: input, shape index: {}]
  %s10 = inlined_call_operand.vmem [shape: f32[2,16,128], index: 10, kind: output, shape index: {}]
  %s11 = sld [smem:[#allocation0]]
  $region58: #{gated_double_conv.1} parent=0
    _
  %s13 = ssub.s32 1, %s11
  %s14 = scalar_select 0, %s13, %s11
  $region1: #{gated_double_conv.1} parent=0
    #allocation4 [shape = 'u8[98304]{0}', space=vmem, size = 0x18000, scoped, tag = 'input window, operand 1, single buffered']
    #allocation5 [shape = 's32[1]{0}', space=sflag, size = 0x4, scoped, tag = 'scoped memory for gated_double_conv.1']
    #allocation6 [shape = 'u8[65536]{0}', space=vmem, size = 0x10000, scoped, tag = 'input window, operand 9, single buffered']
    #allocation7 [shape = 's32[1]{0}', space=sflag, size = 0x4, scoped, tag = 'scoped memory for gated_double_conv.1']
    %15 = vsyncpa [#allocation5], 0
    %16 = vsyncpa [#allocation7], 0
    // Predicated region
    $region2: #{gated_double_conv.1} parent=1 // pred_check
      _
    $region3: #{gated_double_conv.1} parent=1 // pred_check_branch
      %18 = sbr.rel (0) target = $region5
    $region4: #{gated_double_conv.1} parent=1 // pred_region
      _
    $region5: #{gated_double_conv.1} parent=1 // pred_fallthru
      _
    // Predicated region
    $region6: #{gated_double_conv.1} parent=1 // pred_check
      _
    $region7: #{gated_double_conv.1} parent=1 // pred_check_branch
      %20 = sbr.rel (0) target = $region9
    $region8: #{gated_double_conv.1} parent=1 // pred_region
      %s22 = ssub.s32 3072, 3072
      %23 = vsyncadd [#allocation5], %s22
      %s24 = sshll.u32 [#allocation4], 4
      %s25 = int_to_ptr.vmem [resolvable:$true] %s24
      %30 = dma.hbm_to_vmem [thread:$0]  %s1, 3072, %s25, [#allocation5], 128, 128, 8
    $region9: #{gated_double_conv.1} parent=1 // pred_fallthru
      _
    // Predicated region
    $region10: #{gated_double_conv.1} parent=1 // pred_check
      _
    $region11: #{gated_double_conv.1} parent=1 // pred_check_branch
      %32 = sbr.rel (0) target = $region13
    $region12: #{gated_double_conv.1} parent=1 // pred_region
      _
    $region13: #{gated_double_conv.1} parent=1 // pred_fallthru
      _
    // Predicated region
    $region14: #{gated_double_conv.1} parent=1 // pred_check
      _
    $region15: #{gated_double_conv.1} parent=1 // pred_check_branch
      %34 = sbr.rel (0) target = $region17
    $region16: #{gated_double_conv.1} parent=1 // pred_region
      _
    $region17: #{gated_double_conv.1} parent=1 // pred_fallthru
      _
    // Predicated region
    $region18: #{gated_double_conv.1} parent=1 // pred_check
      _
    $region19: #{gated_double_conv.1} parent=1 // pred_check_branch
      %36 = sbr.rel (0) target = $region21
    $region20: #{gated_double_conv.1} parent=1 // pred_region
      _
    $region21: #{gated_double_conv.1} parent=1 // pred_fallthru
      _
    // Predicated region
    $region22: #{gated_double_conv.1} parent=1 // pred_check
      _
    $region23: #{gated_double_conv.1} parent=1 // pred_check_branch
      %38 = sbr.rel (0) target = $region25
    $region24: #{gated_double_conv.1} parent=1 // pred_region
      _
    $region25: #{gated_double_conv.1} parent=1 // pred_fallthru
      _
    // Predicated region
    $region26: #{gated_double_conv.1} parent=1 // pred_check
      _
    $region27: #{gated_double_conv.1} parent=1 // pred_check_branch
      %40 = sbr.rel (0) target = $region29
    $region28: #{gated_double_conv.1} parent=1 // pred_region
      _
    $region29: #{gated_double_conv.1} parent=1 // pred_fallthru
      _
    // Predicated region
    $region30: #{gated_double_conv.1} parent=1 // pred_check
      _
    $region31: #{gated_double_conv.1} parent=1 // pred_check_branch
      %42 = sbr.rel (0) target = $region33
    $region32: #{gated_double_conv.1} parent=1 // pred_region
      _
    $region33: #{gated_double_conv.1} parent=1 // pred_fallthru
      _
    // Predicated region
    $region34: #{gated_double_conv.1} parent=1 // pred_check
      _
    $region35: #{gated_double_conv.1} parent=1 // pred_check_branch
      %44 = sbr.rel (0) target = $region37
    $region36: #{gated_double_conv.1} parent=1 // pred_region
      _
    $region37: #{gated_double_conv.1} parent=1 // pred_fallthru
      _
    // Predicated region
    $region38: #{gated_double_conv.1} parent=1 // pred_check
      _
    $region39: #{gated_double_conv.1} parent=1 // pred_check_branch
      %46 = sbr.rel (0) target = $region41
    $region40: #{gated_double_conv.1} parent=1 // pred_region
      %s48 = ssub.s32 2048, 2048
      %49 = vsyncadd [#allocation7], %s48
      %s50 = sshll.u32 [#allocation6], 4
      %s51 = int_to_ptr.vmem [resolvable:$true] %s50
      %56 = dma.hbm_to_vmem [thread:$0]  %s9, 2048, %s51, [#allocation7], 128, 128, 8
    $region41: #{gated_double_conv.1} parent=1 // pred_fallthru
      _
    // Predicated region
    $region42: #{gated_double_conv.1} parent=1 // pred_check
      _
    $region43: #{gated_double_conv.1} parent=1 // pred_check_branch
      %58 = sbr.rel (0) target = $region45
    $region44: #{gated_double_conv.1} parent=1 // pred_region
      %59 = dma.done [#allocation5], 3072
    $region45: #{gated_double_conv.1} parent=1 // pred_fallthru
      _
    // Predicated region
    $region46: #{gated_double_conv.1} parent=1 // pred_check
      _
    $region47: #{gated_double_conv.1} parent=1 // pred_check_branch
      %61 = sbr.rel (0) target = $region49
    $region48: #{gated_double_conv.1} parent=1 // pred_region
      %62 = dma.done [#allocation7], 2048
    $region49: #{gated_double_conv.1} parent=1 // pred_fallthru
      _
    %v64 = vlaneseq
    %v65 = vshrl.u32 %v64, 7
    %v66 = vadd.s32 %v65, 8
    %v67 = vadd.s32 %v65, 16
    %v68 = vadd.s32 %v65, 24
    %v69 = vadd.s32 %v65, 32
    %vm70 = vcmp.lt.s32.totalorder %v65, 0
    %v71 = vsub.s32 0, %v65
    %v72 = vsel %vm70, %v71, %v65
    %v73 = vmul.u32.u64.compose %v72, 3817748708
    %v74 = vextract.low.u32 %v73
    %v75 = vextract.high.u32 %v73
    %v76 = vshrl.u32 %v75, 4
    %v77 = vmul.u32 %v76, 18
    %v78 = vsub.s32 %v72, %v77
    %v79 = vsub.s32 0, %v78
    %v80 = vsel %vm70, %v79, %v78
    %vm81 = vcmp.lt.s32.totalorder %v66, 0
    %v82 = vsub.s32 0, %v66
    %v83 = vsel %vm81, %v82, %v66
    %v84 = vmul.u32.u64.compose %v83, 3817748708
    %v85 = vextract.low.u32 %v84
    %v86 = vextract.high.u32 %v84
    %v87 = vshrl.u32 %v86, 4
    %v88 = vmul.u32 %v87, 18
    %v89 = vsub.s32 %v83, %v88
    %v90 = vsub.s32 0, %v89
    %v91 = vsel %vm81, %v90, %v89
    %vm92 = vcmp.lt.s32.totalorder %v67, 0
    %v93 = vsub.s32 0, %v67
    %v94 = vsel %vm92, %v93, %v67
    %v95 = vmul.u32.u64.compose %v94, 3817748708
    %v96 = vextract.low.u32 %v95
    %v97 = vextract.high.u32 %v95
    %v98 = vshrl.u32 %v97, 4
    %v99 = vmul.u32 %v98, 18
    %v100 = vsub.s32 %v94, %v99
    %v101 = vsub.s32 0, %v100
    %v102 = vsel %vm92, %v101, %v100
    %vm103 = vcmp.lt.s32.totalorder %v68, 0
    %v104 = vsub.s32 0, %v68
    %v105 = vsel %vm103, %v104, %v68
    %v106 = vmul.u32.u64.compose %v105, 3817748708
    %v107 = vextract.low.u32 %v106
    %v108 = vextract.high.u32 %v106
    %v109 = vshrl.u32 %v108, 4
    %v110 = vmul.u32 %v109, 18
    %v111 = vsub.s32 %v105, %v110
    %v112 = vsub.s32 0, %v111
    %v113 = vsel %vm103, %v112, %v111
    %vm114 = vcmp.lt.s32.totalorder %v69, 0
    %v115 = vsub.s32 0, %v69
    %v116 = vsel %vm114, %v115, %v69
    %v117 = vmul.u32.u64.compose %v116, 3817748708
    %v118 = vextract.low.u32 %v117
    %v119 = vextract.high.u32 %v117
    %v120 = vshrl.u32 %v119, 4
    %v121 = vmul.u32 %v120, 18
    %v122 = vsub.s32 %v116, %v121
    %v123 = vsub.s32 0, %v122
    %v124 = vsel %vm114, %v123, %v122
    %vm125 = vcmp.ne.s32.totalorder %v80, 0
    %vm126 = vcmp.ne.s32.totalorder %v91, 0
    %vm127 = vcmp.ne.s32.totalorder %v102, 0
    %vm128 = vcmp.ne.s32.totalorder %v113, 0
    %vm129 = vcmp.ne.s32.totalorder %v124, 0
    %vm130 = vcmp.lt.s32.totalorder %v80, 0
    %vm131 = vcmp.lt.s32.totalorder %v91, 0
    %vm132 = vcmp.lt.s32.totalorder %v102, 0
    %vm133 = vcmp.lt.s32.totalorder %v113, 0
    %vm134 = vcmp.lt.s32.totalorder %v124, 0
    %vm135 = vmand %vm130, %vm125
    %vm136 = vmand %vm131, %vm126
    %vm137 = vmand %vm132, %vm127
    %vm138 = vmand %vm133, %vm128
    %vm139 = vmand %vm134, %vm129
    %v140 = vadd.s32 %v80, 18
    %v141 = vadd.s32 %v91, 18
    %v142 = vadd.s32 %v102, 18
    %v143 = vadd.s32 %v113, 18
    %v144 = vadd.s32 %v124, 18
    %v145 = vsel %vm135, %v140, %v80
    %v146 = vsel %vm136, %v141, %v91
    %v147 = vsel %vm137, %v142, %v102
    %v148 = vsel %vm138, %v143, %v113
    %v149 = vsel %vm139, %v144, %v124
    %vm150 = vcmp.lt.s32.totalorder %v145, 16
    %vm151 = vcmp.lt.s32.totalorder %v146, 16
    %vm152 = vcmp.lt.s32.totalorder %v147, 16
    %vm153 = vcmp.lt.s32.totalorder %v148, 16
    %vm154 = vcmp.lt.s32.totalorder %v149, 16
    %vm155 = vcmask 519168
    %156 = vst.msk [vmem:[#allocation2] sm:$0xf] %vm155, 0
    %157 = vst.msk [vmem:[#allocation2 + $0x4] sm:$0xf] %vm155, 0
    %158 = vst.msk [vmem:[#allocation2 + $0x8] sm:$0xf] %vm155, 0
    %159 = vst.msk [vmem:[#allocation2 + $0xc] sm:$0xf] %vm155, 0
    %vm160 = vcmask 517120
    %161 = vst.msk [vmem:[#allocation2 + $0x10] sm:$0x3] %vm160, 0
    %v162 = vld [vmem:[%s0] sm:$0xf]
    %v163 = vld [vmem:[%s0 + $0x4] sm:$0xf]
    %vm164 = vsmask.f32 256
    %vm165 = vsmask.f32 4368
    %vm166 = vmor %vm164, %vm165
    %v168 = vshrl.u32 %v162, 16
    %v170 = vrot.slane %v168, 7
    %v171 = vshll.u32 %v162, 16
    %v173 = vor.u32 %v170, %v171
    %v174 = vrot.slane %v170, 4
    %v176 = vshrl.u32 %v163, 16
    %v178 = vrot.slane %v176, 7
    %v179 = vshll.u32 %v163, 16
    %v181 = vor.u32 %v178, %v179
    %v182 = vsel %vm166, %v174, %v181
    %v183 = vrot.slane %v178, 4
    %vm187 = vcmask 519168
    %vm188 = vsmask.f32 7938
    %vm189 = vmand %vm187, %vm188
    %v190 = vld [vmem:[#allocation2] sm:$0xf]
    %v191 = vsel %vm189, %v173, %v190
    %192 = vst [vmem:[#allocation2] sm:$0xf] %v191
    %193 = vst.msk [vmem:[#allocation2 + $0x4] sm:$0xf] %vm155, %v182
    %vm194 = vcmask 516096
    %vm195 = vmand %vm194, %vm164
    %v196 = vld [vmem:[#allocation2 + $0x8] sm:$0x1]
    %v197 = vsel %vm195, %v183, %v196
    %198 = vst [vmem:[#allocation2 + $0x8] sm:$0x1] %v197
    %s199 = scalar_lea.vmem %s0, 8
    %v200 = vld [vmem:[%s199] sm:$0xf]
    %v201 = vld [vmem:[%s199 + $0x4] sm:$0xf]
    %vm202 = vsmask.f32 1280
    %vm203 = vsmask.f32 5392
    %vm204 = vmor %vm202, %vm203
    %v206 = vshrl.u32 %v200, 16
    %v208 = vrot.slane %v206, 6
    %v209 = vshll.u32 %v200, 16
    %v211 = vrot.slane %v209, 7
    %v212 = vor.u32 %v208, %v211
    %v213 = vrot.slane %v212, 4
    %v215 = vshrl.u32 %v201, 16
    %v217 = vrot.slane %v215, 6
    %v218 = vshll.u32 %v201, 16
    %v220 = vrot.slane %v218, 7
    %v221 = vor.u32 %v217, %v220
    %v222 = vsel %vm204, %v213, %v221
    %v223 = vrot.slane %v221, 4
    %vm227 = vcmask 519169
    %vm228 = vsmask.f32 7942
    %vm229 = vmand %vm227, %vm228
    %v230 = vld [vmem:[#allocation2 + $0x8] sm:$0xe]
    %v231 = vsel %vm229, %v212, %v230
    %232 = vst [vmem:[#allocation2 + $0x8] sm:$0xe] %v231
    %233 = vst.msk [vmem:[#allocation2 + $0xc] sm:$0xf] %vm155, %v222
    %vm234 = vcmask 517120
    %vm235 = vmand %vm234, %vm202
    %v236 = vld [vmem:[#allocation2 + $0x10] sm:$0x3]
    %v237 = vsel %vm235, %v223, %v236
    %238 = vst [vmem:[#allocation2 + $0x10] sm:$0x3] %v237
    %v239 = vld [vmem:[#allocation2] sm:$0xf]
    %v240 = vld [vmem:[#allocation2 + $0x4] sm:$0xf]
    %v241 = vld [vmem:[#allocation2 + $0x8] sm:$0xf]
    %v242 = vld [vmem:[#allocation2 + $0xc] sm:$0xf]
    %v243 = vld [vmem:[#allocation2 + $0x10] sm:$0x1]
    %v244 = vld [vmem:[#allocation4] sm:$0xff]
    %v245 = vld [vmem:[#allocation4 + $0x8] sm:$0xff]
    %v246 = vld [vmem:[#allocation4 + $0x10] sm:$0xff]
    %v247 = vld [vmem:[#allocation4 + $0x18] sm:$0xff]
    %v248 = vld [vmem:[#allocation4 + $0x20] sm:$0xff]
    %v249 = vld [vmem:[#allocation4 + $0x28] sm:$0xff]
    %v250 = vld [vmem:[#allocation4 + $0x30] sm:$0xff]
    %v251 = vld [vmem:[#allocation4 + $0x38] sm:$0xff]
    %v252 = vld [vmem:[#allocation2 + $0x10] sm:$0x3]
    %s253 = scalar_lea.vmem [#allocation4], 64
    %v254 = vld [vmem:[%s253] sm:$0xff]
    %v255 = vld [vmem:[%s253 + $0x8] sm:$0xff]
    %v256 = vld [vmem:[%s253 + $0x10] sm:$0xff]
    %v257 = vld [vmem:[%s253 + $0x18] sm:$0xff]
    %v258 = vld [vmem:[%s253 + $0x20] sm:$0xff]
    %v259 = vld [vmem:[%s253 + $0x28] sm:$0xff]
    %v260 = vld [vmem:[%s253 + $0x30] sm:$0xff]
    %v261 = vld [vmem:[%s253 + $0x38] sm:$0xff]
    %v267 = vunpack.c.l.b16 %v239
    %v268 = vunpack.c.l.b16 %v240
    %v269 = vunpack.c.l.b16 %v241
    %v270 = vunpack.c.l.b16 %v242
    %v271 = vunpack.c.l.b16 %v252
    %v272 = vpack.c.b16 %v268, %v267
    %v273 = vpack.c.b16 %v270, %v269
    %v274 = vpack.c.b16 %v271, %v271
    %vm275 = vsmask.f32 7424
    %v277 = vshrl.u32 %v272, 16
    %v279 = vshll.u32 %v272, 16
    %v281 = vrot.slane %v279, 1
    %v282 = vor.u32 %v277, %v281
    %v284 = vshll.u32 %v273, 16
    %v286 = vrot.slane %v284, 1
    %v287 = vsel %vm275, %v282, %v286
    %v288 = vshrl.u32 %v273, 16
    %v290 = vor.u32 %v288, %v286
    %v292 = vshll.u32 %v274, 16
    %v294 = vrot.slane %v292, 1
    %v295 = vsel %vm275, %v290, %v294
    %v296 = vshrl.u32 %v274, 16
    %v298 = vor.u32 %v296, %v294
    %v307 = vunpack.c.l.b16 %v254
    %v308 = vunpack.c.h.b16 %v254
    %v309 = vunpack.c.l.b16 %v255
    %v310 = vunpack.c.h.b16 %v255
    %v311 = vunpack.c.l.b16 %v256
    %v312 = vunpack.c.h.b16 %v256
    %v313 = vunpack.c.l.b16 %v257
    %v314 = vunpack.c.h.b16 %v257
    %v315 = vunpack.c.l.b16 %v258
    %v316 = vunpack.c.h.b16 %v258
    %v317 = vunpack.c.l.b16 %v259
    %v318 = vunpack.c.h.b16 %v259
    %v319 = vunpack.c.l.b16 %v260
    %v320 = vunpack.c.h.b16 %v260
    %v321 = vunpack.c.l.b16 %v261
    %v322 = vunpack.c.h.b16 %v261
    %v323 = vpack.c.b16 %v309, %v307
    %v324 = vpack.c.b16 %v310, %v308
    %v325 = vpack.c.b16 %v313, %v311
    %v326 = vpack.c.b16 %v314, %v312
    %v327 = vpack.c.b16 %v317, %v315
    %v328 = vpack.c.b16 %v318, %v316
    %v329 = vpack.c.b16 %v321, %v319
    %v330 = vpack.c.b16 %v322, %v320
    %vm339 = vcmask 523264
    %v341 = vsel %vm339, %v287, 0
    %v344 = vsel %vm339, %v295, 0
    %v347 = vsel %vm339, %v298, 0
    %349 = vmatprep.subr.bf16.mxu0 %v324
    %350 = vmatpush1.bf16.msra.mxu0 %v323
    %351 = vmatprep.subr.bf16.mxu0 %v326
    %352 = vmatpush1.bf16.msra.mxu0 %v325
    %353 = vmatprep.subr.bf16.mxu0 %v328
    %354 = vmatpush1.bf16.msra.mxu0 %v327
    %355 = vmatprep.subr.bf16.mxu0 %v330
    %356 = vmatpush1.bf16.msra.mxu0 %v329
    %357 = vmatprep.subr.bf16.mxu0 0
    %358 = vmatpush1.bf16.msra.mxu0 0
    %359 = vmatprep.subr.bf16.mxu0 0
    %360 = vmatpush1.bf16.msra.mxu0 0
    %361 = vmatprep.subr.bf16.mxu0 0
    %362 = vmatpush1.bf16.msra.mxu0 0
    %363 = vmatprep.subr.bf16.mxu0 0
    %364 = vmatpush1.bf16.msra.mxu0 0
    %365 = vmatprep.subr.bf16.mxu0 0
    %366 = vmatpush1.bf16.msra.mxu0 0
    %367 = vmatprep.subr.bf16.mxu0 0
    %368 = vmatpush1.bf16.msra.mxu0 0
    %369 = vmatprep.subr.bf16.mxu0 0
    %370 = vmatpush1.bf16.msra.mxu0 0
    %371 = vmatprep.subr.bf16.mxu0 0
    %372 = vmatpush1.bf16.msra.mxu0 0
    %373 = vmatprep.subr.bf16.mxu0 0
    %374 = vmatpush1.bf16.msra.mxu0 0
    %375 = vmatprep.subr.bf16.mxu0 0
    %376 = vmatpush1.bf16.msra.mxu0 0
    %377 = vmatprep.subr.bf16.mxu0 0
    %378 = vmatpush1.bf16.msra.mxu0 0
    %379 = vmatprep.subr.bf16.mxu0 0
    %380 = vmatpush1.bf16.msra.mxu0 0
    %381 = vmatprep.mubr.bf16.mxu0 0
    %382 = vmatmul.mubr.bf16.gmra.mrb[0].mxu0 %v341
    %v383 = vpop.f32.mrb[0].mxu0
    %v384 = vadd.f32 0.0, %v383
    %v385 = vpop.f32.mrb[0].mxu0
    %v386 = vadd.f32 0.0, %v385
    %v387 = vpop.f32.mrb[0].mxu0
    %v388 = vadd.f32 0.0, %v387
    %v389 = vpop.f32.mrb[0].mxu0
    %v390 = vadd.f32 0.0, %v389
    %391 = vmatprep.mubr.bf16.mxu0 0
    %392 = vmatmul.mubr.bf16.gmra.mrb[0].mxu0 %v344
    %v393 = vpop.f32.mrb[0].mxu0
    %v394 = vadd.f32 0.0, %v393
    %v395 = vpop.f32.mrb[0].mxu0
    %v396 = vadd.f32 0.0, %v395
    %v397 = vpop.f32.mrb[0].mxu0
    %v398 = vadd.f32 0.0, %v397
    %v399 = vpop.f32.mrb[0].mxu0
    %v400 = vadd.f32 0.0, %v399
    %401 = vmatprep.mubr.bf16.mxu0 0
    %402 = vmatmul.mubr.bf16.gmra.mrb[0].mxu0 %v347
    %v403 = vpop.f32.mrb[0].mxu0
    %v404 = vadd.f32 0.0, %v403
    %v405 = vpop.f32.mrb[0].mxu0
    %v406 = vadd.f32 0.0, %v405
    %v407 = vpop.f32.mrb[0].mxu0
    %v408 = vpop.f32.mrb[0].mxu0
    %409 = vdwg.mxu0
    %v411 = vunpack.c.l.b16 %v243
    %v412 = vpack.c.b16 %v411, %v411
    %v421 = vunpack.c.l.b16 %v244
    %v422 = vunpack.c.h.b16 %v244
    %v423 = vunpack.c.l.b16 %v245
    %v424 = vunpack.c.h.b16 %v245
    %v425 = vunpack.c.l.b16 %v246
    %v426 = vunpack.c.h.b16 %v246
    %v427 = vunpack.c.l.b16 %v247
    %v428 = vunpack.c.h.b16 %v247
    %v429 = vunpack.c.l.b16 %v248
    %v430 = vunpack.c.h.b16 %v248
    %v431 = vunpack.c.l.b16 %v249
    %v432 = vunpack.c.h.b16 %v249
    %v433 = vunpack.c.l.b16 %v250
    %v434 = vunpack.c.h.b16 %v250
    %v435 = vunpack.c.l.b16 %v251
    %v436 = vunpack.c.h.b16 %v251
    %v437 = vpack.c.b16 %v423, %v421
    %v438 = vpack.c.b16 %v424, %v422
    %v439 = vpack.c.b16 %v427, %v425
    %v440 = vpack.c.b16 %v428, %v426
    %v441 = vpack.c.b16 %v431, %v429
    %v442 = vpack.c.b16 %v432, %v430
    %v443 = vpack.c.b16 %v435, %v433
    %v444 = vpack.c.b16 %v436, %v434
    %v453 = vsel %vm339, %v272, 0
    %v455 = vsel %vm339, %v273, 0
    %v458 = vsel %vm339, %v412, 0
    %460 = vmatprep.subr.bf16.mxu0 %v438
    %461 = vmatpush1.bf16.msra.mxu0 %v437
    %462 = vmatprep.subr.bf16.mxu0 %v440
    %463 = vmatpush1.bf16.msra.mxu0 %v439
    %464 = vmatprep.subr.bf16.mxu0 %v442
    %465 = vmatpush1.bf16.msra.mxu0 %v441
    %466 = vmatprep.subr.bf16.mxu0 %v444
    %467 = vmatpush1.bf16.msra.mxu0 %v443
    %468 = vmatprep.subr.bf16.mxu0 0
    %469 = vmatpush1.bf16.msra.mxu0 0
    %470 = vmatprep.subr.bf16.mxu0 0
    %471 = vmatpush1.bf16.msra.mxu0 0
    %472 = vmatprep.subr.bf16.mxu0 0
    %473 = vmatpush1.bf16.msra.mxu0 0
    %474 = vmatprep.subr.bf16.mxu0 0
    %475 = vmatpush1.bf16.msra.mxu0 0
    %476 = vmatprep.subr.bf16.mxu0 0
    %477 = vmatpush1.bf16.msra.mxu0 0
    %478 = vmatprep.subr.bf16.mxu0 0
    %479 = vmatpush1.bf16.msra.mxu0 0
    %480 = vmatprep.subr.bf16.mxu0 0
    %481 = vmatpush1.bf16.msra.mxu0 0
    %482 = vmatprep.subr.bf16.mxu0 0
    %483 = vmatpush1.bf16.msra.mxu0 0
    %484 = vmatprep.subr.bf16.mxu0 0
    %485 = vmatpush1.bf16.msra.mxu0 0
    %486 = vmatprep.subr.bf16.mxu0 0
    %487 = vmatpush1.bf16.msra.mxu0 0
    %488 = vmatprep.subr.bf16.mxu0 0
    %489 = vmatpush1.bf16.msra.mxu0 0
    %490 = vmatprep.subr.bf16.mxu0 0
    %491 = vmatpush1.bf16.msra.mxu0 0
    %492 = vmatprep.mubr.bf16.mxu0 0
    %493 = vmatmul.mubr.bf16.gmra.mrb[0].mxu0 %v453
    %v494 = vpop.f32.mrb[0].mxu0
    %v495 = vadd.f32 %v384, %v494
    %v496 = vpop.f32.mrb[0].mxu0
    %v497 = vadd.f32 %v386, %v496
    %v498 = vpop.f32.mrb[0].mxu0
    %v499 = vadd.f32 %v388, %v498
    %v500 = vpop.f32.mrb[0].mxu0
    %v501 = vadd.f32 %v390, %v500
    %502 = vmatprep.mubr.bf16.mxu0 0
    %503 = vmatmul.mubr.bf16.gmra.mrb[0].mxu0 %v455
    %v504 = vpop.f32.mrb[0].mxu0
    %v505 = vadd.f32 %v394, %v504
    %v506 = vpop.f32.mrb[0].mxu0
    %v507 = vadd.f32 %v396, %v506
    %v508 = vpop.f32.mrb[0].mxu0
    %v509 = vadd.f32 %v398, %v508
    %v510 = vpop.f32.mrb[0].mxu0
    %v511 = vadd.f32 %v400, %v510
    %512 = vmatprep.mubr.bf16.mxu0 0
    %513 = vmatmul.mubr.bf16.gmra.mrb[0].mxu0 %v458
    %v514 = vpop.f32.mrb[0].mxu0
    %v515 = vadd.f32 %v404, %v514
    %v516 = vpop.f32.mrb[0].mxu0
    %v517 = vadd.f32 %v406, %v516
    %v518 = vpop.f32.mrb[0].mxu0
    %v519 = vpop.f32.mrb[0].mxu0
    %520 = vdwg.mxu0
    %v521 = vld [vmem:[#allocation2] sm:$0xe]
    %s522 = scalar_lea.vmem [#allocation4], 128
    %v523 = vld [vmem:[%s522] sm:$0xff]
    %v524 = vld [vmem:[%s522 + $0x8] sm:$0xff]
    %v525 = vld [vmem:[%s522 + $0x10] sm:$0xff]
    %v526 = vld [vmem:[%s522 + $0x18] sm:$0xff]
    %v527 = vld [vmem:[%s522 + $0x20] sm:$0xff]
    %v528 = vld [vmem:[%s522 + $0x28] sm:$0xff]
    %v529 = vld [vmem:[%s522 + $0x30] sm:$0xff]
    %v530 = vld [vmem:[%s522 + $0x38] sm:$0xff]
    %v532 = vunpack.c.l.b16 %v521
    %v533 = vpack.c.b16 %v268, %v532
    %vm534 = vcmask 1046528
    %v535 = vrot.slane %v533, 1
    %v536 = vrot.slane %v273, 1
    %v537 = vsel %vm534, %v535, %v536
    %v538 = vrot.slane %v274, 1
    %v539 = vsel %vm534, %v536, %v538
    %v548 = vunpack.c.l.b16 %v523
    %v549 = vunpack.c.h.b16 %v523
    %v550 = vunpack.c.l.b16 %v524
    %v551 = vunpack.c.h.b16 %v524
    %v552 = vunpack.c.l.b16 %v525
    %v553 = vunpack.c.h.b16 %v525
    %v554 = vunpack.c.l.b16 %v526
    %v555 = vunpack.c.h.b16 %v526
    %v556 = vunpack.c.l.b16 %v527
    %v557 = vunpack.c.h.b16 %v527
    %v558 = vunpack.c.l.b16 %v528
    %v559 = vunpack.c.h.b16 %v528
    %v560 = vunpack.c.l.b16 %v529
    %v561 = vunpack.c.h.b16 %v529
    %v562 = vunpack.c.l.b16 %v530
    %v563 = vunpack.c.h.b16 %v530
    %v564 = vpack.c.b16 %v550, %v548
    %v565 = vpack.c.b16 %v551, %v549
    %v566 = vpack.c.b16 %v554, %v552
    %v567 = vpack.c.b16 %v555, %v553
    %v568 = vpack.c.b16 %v558, %v556
    %v569 = vpack.c.b16 %v559, %v557
    %v570 = vpack.c.b16 %v562, %v560
    %v571 = vpack.c.b16 %v563, %v561
    %v581 = vsel %vm339, %v537, 0
    %v584 = vsel %vm339, %v539, 0
    %v587 = vsel %vm339, %v538, 0
    %589 = vmatprep.subr.bf16.mxu0 %v565
    %590 = vmatpush1.bf16.msra.mxu0 %v564
    %591 = vmatprep.subr.bf16.mxu0 %v567
    %592 = vmatpush1.bf16.msra.mxu0 %v566
    %593 = vmatprep.subr.bf16.mxu0 %v569
    %594 = vmatpush1.bf16.msra.mxu0 %v568
    %595 = vmatprep.subr.bf16.mxu0 %v571
    %596 = vmatpush1.bf16.msra.mxu0 %v570
    %597 = vmatprep.subr.bf16.mxu0 0
    %598 = vmatpush1.bf16.msra.mxu0 0
    %599 = vmatprep.subr.bf16.mxu0 0
    %600 = vmatpush1.bf16.msra.mxu0 0
    %601 = vmatprep.subr.bf16.mxu0 0
    %602 = vmatpush1.bf16.msra.mxu0 0
    %603 = vmatprep.subr.bf16.mxu0 0
    %604 = vmatpush1.bf16.msra.mxu0 0
    %605 = vmatprep.subr.bf16.mxu0 0
    %606 = vmatpush1.bf16.msra.mxu0 0
    %607 = vmatprep.subr.bf16.mxu0 0
    %608 = vmatpush1.bf16.msra.mxu0 0
    %609 = vmatprep.subr.bf16.mxu0 0
    %610 = vmatpush1.bf16.msra.mxu0 0
    %611 = vmatprep.subr.bf16.mxu0 0
    %612 = vmatpush1.bf16.msra.mxu0 0
    %613 = vmatprep.subr.bf16.mxu0 0
    %614 = vmatpush1.bf16.msra.mxu0 0
    %615 = vmatprep.subr.bf16.mxu0 0
    %616 = vmatpush1.bf16.msra.mxu0 0
    %617 = vmatprep.subr.bf16.mxu0 0
    %618 = vmatpush1.bf16.msra.mxu0 0
    %619 = vmatprep.subr.bf16.mxu0 0
    %620 = vmatpush1.bf16.msra.mxu0 0
    %621 = vmatprep.mubr.bf16.mxu0 0
    %622 = vmatmul.mubr.bf16.gmra.mrb[0].mxu0 %v581
    %v623 = vpop.f32.mrb[0].mxu0
    %v624 = vadd.f32 0.0, %v623
    %v625 = vpop.f32.mrb[0].mxu0
    %v626 = vadd.f32 0.0, %v625
    %v627 = vpop.f32.mrb[0].mxu0
    %v628 = vadd.f32 0.0, %v627
    %v629 = vpop.f32.mrb[0].mxu0
    %v630 = vadd.f32 0.0, %v629
    %631 = vmatprep.mubr.bf16.mxu0 0
    %632 = vmatmul.mubr.bf16.gmra.mrb[0].mxu0 %v584
    %v633 = vpop.f32.mrb[0].mxu0
    %v634 = vadd.f32 0.0, %v633
    %v635 = vpop.f32.mrb[0].mxu0
    %v636 = vadd.f32 0.0, %v635
    %v637 = vpop.f32.mrb[0].mxu0
    %v638 = vadd.f32 0.0, %v637
    %v639 = vpop.f32.mrb[0].mxu0
    %v640 = vadd.f32 0.0, %v639
    %641 = vmatprep.mubr.bf16.mxu0 0
    %642 = vmatmul.mubr.bf16.gmra.mrb[0].mxu0 %v587
    %v643 = vpop.f32.mrb[0].mxu0
    %v644 = vadd.f32 0.0, %v643
    %v645 = vpop.f32.mrb[0].mxu0
    %v646 = vadd.f32 0.0, %v645
    %v647 = vpop.f32.mrb[0].mxu0
    %v648 = vpop.f32.mrb[0].mxu0
    %649 = vdwg.mxu0
    %v650 = vadd.f32 %v495, %v624
    %v651 = vadd.f32 %v497, %v626
    %v652 = vadd.f32 %v499, %v628
    %v653 = vadd.f32 %v501, %v630
    %v654 = vadd.f32 %v505, %v634
    %v655 = vadd.f32 %v507, %v636
    %v656 = vadd.f32 %v509, %v638
    %v657 = vadd.f32 %v511, %v640
    %v658 = vadd.f32 %v515, %v644
    %v659 = vadd.f32 %v517, %v646
    %v660 = vld [vmem:[%s2] sm:$0x3]
    %v662 = vlaneseq
    %v663 = vshrl.u32 %v662, 7
    %v664 = vsub.s32 0, %v663
    %v665 = vrot.slane %v660, %v664
    %v666 = vlaneseq
    %v667 = vshrl.u32 %v666, 7
    %v668 = vsub.s32 1, %v667
    %v669 = vrot.slane %v660, %v668
    %v672 = vadd.f32 %v650, %v665
    %v673 = vadd.f32 %v651, %v669
    %v674 = vadd.f32 %v652, %v665
    %v675 = vadd.f32 %v653, %v669
    %v676 = vadd.f32 %v654, %v665
    %v677 = vadd.f32 %v655, %v669
    %v678 = vadd.f32 %v656, %v665
    %v679 = vadd.f32 %v657, %v669
    %v680 = vadd.f32 %v658, %v665
    %v681 = vadd.f32 %v659, %v669
    %v682 = vxor.u32 %v673, 2147483648
    %v683 = vxor.u32 %v675, 2147483648
    %v684 = vxor.u32 %v677, 2147483648
    %v685 = vxor.u32 %v679, 2147483648
    %v686 = vxor.u32 %v681, 2147483648
    %v687 = vmul.f32 %v682, 1.442695
    %v688 = vpow.pop %v687
    %v689 = vmul.f32 %v683, 1.442695
    %v690 = vpow.pop %v689
    %v691 = vmul.f32 %v684, 1.442695
    %v692 = vpow.pop %v691
    %v693 = vmul.f32 %v685, 1.442695
    %v694 = vpow.pop %v693
    %v695 = vmul.f32 %v686, 1.442695
    %v696 = vpow.pop %v695
    %v697 = vadd.f32 %v688, 1.0
    %v698 = vadd.f32 %v690, 1.0
    %v699 = vadd.f32 %v692, 1.0
    %v700 = vadd.f32 %v694, 1.0
    %v701 = vadd.f32 %v696, 1.0
    %v702 = vrcp.pop %v697
    %v703 = vmul.f32 1.0, %v702
    %v704 = vrcp.pop %v698
    %v705 = vmul.f32 1.0, %v704
    %v706 = vrcp.pop %v699
    %v707 = vmul.f32 1.0, %v706
    %v708 = vrcp.pop %v700
    %v709 = vmul.f32 1.0, %v708
    %v710 = vrcp.pop %v701
    %v711 = vmul.f32 1.0, %v710
    %v712 = vmul.f32 %v672, %v703
    %v713 = vmul.f32 %v674, %v705
    %v714 = vmul.f32 %v676, %v707
    %v715 = vmul.f32 %v678, %v709
    %v716 = vmul.f32 %v680, %v711
    %v717 = vsel %vm150, 1, 0
    %v718 = vsel %vm151, 1, 0
    %v719 = vsel %vm152, 1, 0
    %v720 = vsel %vm153, 1, 0
    %v721 = vsel %vm154, 1, 0
    %vm722 = vcmp.eq.s32.totalorder %v717, 1
    %vm723 = vcmp.eq.s32.totalorder %v718, 1
    %vm724 = vcmp.eq.s32.totalorder %v719, 1
    %vm725 = vcmp.eq.s32.totalorder %v720, 1
    %vm726 = vcmp.eq.s32.totalorder %v721, 1
    %v727 = vsel %vm722, %v712, 0.0
    %v728 = vsel %vm723, %v713, 0.0
    %v729 = vsel %vm724, %v714, 0.0
    %v730 = vsel %vm725, %v715, 0.0
    %v731 = vsel %vm726, %v716, 0.0
    %v732 = vadd.f32 %v727, %v728
    %v733 = vadd.f32 %v732, %v729
    %v734 = vadd.f32 %v733, %v730
    %vm735 = vcmask 1041408
    %v736 = vsel %vm735, %v731, 0.0
    %v737 = vadd.f32 %v734, %v736
    %v738 = vrot.slane %v737, 4
    %v739 = vadd.f32 %v737, %v738
    %v740 = vrot.slane %v739, 2
    %v741 = vadd.f32 %v739, %v740
    %v742 = vrot.slane %v741, 1
    %v743 = vadd.f32 %v741, %v742
    %v744 = vmul.f32 %v727, %v727
    %v745 = vmul.f32 %v728, %v728
    %v746 = vmul.f32 %v729, %v729
    %v747 = vmul.f32 %v730, %v730
    %v748 = vmul.f32 %v731, %v731
    %v749 = vadd.f32 %v744, %v745
    %v750 = vadd.f32 %v749, %v746
    %v751 = vadd.f32 %v750, %v747
    %v752 = vsel %vm735, %v748, 0.0
    %v753 = vadd.f32 %v751, %v752
    %v754 = vrot.slane %v753, 4
    %v755 = vadd.f32 %v753, %v754
    %v756 = vrot.slane %v755, 2
    %v757 = vadd.f32 %v755, %v756
    %v758 = vrot.slane %v757, 1
    %v759 = vadd.f32 %v757, %v758
    %vm760 = vcmask 1040384
    %v761 = vsel %vm760, %v743, %v759
    %v762 = vld [vmem:[#allocation6] sm:$0xff]
    %v763 = vld [vmem:[#allocation6 + $0x8] sm:$0xff]
    %v764 = vld [vmem:[#allocation6 + $0x10] sm:$0xff]
    %v765 = vld [vmem:[#allocation6 + $0x18] sm:$0xff]
    %v766 = vld [vmem:[#allocation6 + $0x20] sm:$0xff]
    %v767 = vld [vmem:[#allocation6 + $0x28] sm:$0xff]
    %v768 = vld [vmem:[#allocation6 + $0x30] sm:$0xff]
    %v769 = vld [vmem:[#allocation6 + $0x38] sm:$0xff]
    %v770 = vld [vmem:[#allocation6 + $0x40] sm:$0xff]
    %v771 = vld [vmem:[#allocation6 + $0x48] sm:$0xff]
    %v772 = vld [vmem:[#allocation6 + $0x50] sm:$0xff]
    %v773 = vld [vmem:[#allocation6 + $0x58] sm:$0xff]
    %v774 = vld [vmem:[#allocation6 + $0x60] sm:$0xff]
    %v775 = vld [vmem:[#allocation6 + $0x68] sm:$0xff]
    %v776 = vld [vmem:[#allocation6 + $0x70] sm:$0xff]
    %v777 = vld [vmem:[#allocation6 + $0x78] sm:$0xff]
    %778 = vmatprep.subr.mxu0 0.0
    %779 = vmatpush1.msra.mxu0 %v762
    %780 = vmatprep.subr.mxu0 0.0
    %781 = vmatpush1.msra.mxu0 %v763
    %782 = vmatprep.subr.mxu0 0.0
    %783 = vmatpush1.msra.mxu0 %v764
    %784 = vmatprep.subr.mxu0 0.0
    %785 = vmatpush1.msra.mxu0 %v765
    %786 = vmatprep.subr.mxu0 0.0
    %787 = vmatpush1.msra.mxu0 %v766
    %788 = vmatprep.subr.mxu0 0.0
    %789 = vmatpush1.msra.mxu0 %v767
    %790 = vmatprep.subr.mxu0 0.0
    %791 = vmatpush1.msra.mxu0 %v768
    %792 = vmatprep.subr.mxu0 0.0
    %793 = vmatpush1.msra.mxu0 %v769
    %794 = vmatprep.subr.mxu0 0.0
    %795 = vmatpush1.msra.mxu0 %v770
    %796 = vmatprep.subr.mxu0 0.0
    %797 = vmatpush1.msra.mxu0 %v771
    %798 = vmatprep.subr.mxu0 0.0
    %799 = vmatpush1.msra.mxu0 %v772
    %800 = vmatprep.subr.mxu0 0.0
    %801 = vmatpush1.msra.mxu0 %v773
    %802 = vmatprep.subr.mxu0 0.0
    %803 = vmatpush1.msra.mxu0 %v774
    %804 = vmatprep.subr.mxu0 0.0
    %805 = vmatpush1.msra.mxu0 %v775
    %806 = vmatprep.subr.mxu0 0.0
    %807 = vmatpush1.msra.mxu0 %v776
    %808 = vmatprep.subr.mxu0 0.0
    %809 = vmatpush1.msra.mxu0 %v777
    %810 = vmatprep.subr.mxu0 0.0
    %811 = vmatpush1.msra.mxu0 0.0
    %812 = vmatprep.subr.mxu0 0.0
    %813 = vmatpush1.msra.mxu0 0.0
    %814 = vmatprep.subr.mxu0 0.0
    %815 = vmatpush1.msra.mxu0 0.0
    %816 = vmatprep.subr.mxu0 0.0
    %817 = vmatpush1.msra.mxu0 0.0
    %818 = vmatprep.subr.mxu0 0.0
    %819 = vmatpush1.msra.mxu0 0.0
    %820 = vmatprep.subr.mxu0 0.0
    %821 = vmatpush1.msra.mxu0 0.0
    %822 = vmatprep.subr.mxu0 0.0
    %823 = vmatpush1.msra.mxu0 0.0
    %824 = vmatprep.subr.mxu0 0.0
    %825 = vmatpush1.msra.mxu0 0.0
    %826 = vmatprep.subr.mxu0 0.0
    %827 = vmatpush1.msra.mxu0 0.0
    %828 = vmatprep.subr.mxu0 0.0
    %829 = vmatpush1.msra.mxu0 0.0
    %830 = vmatprep.subr.mxu0 0.0
    %831 = vmatpush1.msra.mxu0 0.0
    %832 = vmatprep.subr.mxu0 0.0
    %833 = vmatpush1.msra.mxu0 0.0
    %834 = vmatprep.subr.mxu0 0.0
    %835 = vmatpush1.msra.mxu0 0.0
    %836 = vmatprep.subr.mxu0 0.0
    %837 = vmatpush1.msra.mxu0 0.0
    %838 = vmatprep.subr.mxu0 0.0
    %839 = vmatpush1.msra.mxu0 0.0
    %840 = vmatprep.subr.mxu0 0.0
    %841 = vmatpush1.msra.mxu0 0.0
    %842 = vmatprep.mubr.f32.mxu0 0.0
    %843 = vmatmul.mubr.f32.gmra.mrb[0].mxu0 %v761
    %v844 = vpop.f32.mrb[0].mxu0
    %v845 = vadd.f32 0.0, %v844
    %v846 = vpop.f32.mrb[0].mxu0
    %847 = vdwg.mxu0
    %v848 = vrcp.pop 512.0
    %v849 = vmul.f32 %v845, %v848
    %v850 = vmul.f32 %v849, %v849
    %v852 = vrot.slane %v850, 7
    %v854 = vsub.f32 %v849, %v852
    %v855 = vmax.f32 %v854, 0.0
    %v856 = vld [vmem:[%s3] sm:$0x1]
    %v857 = vadd.f32 %v855, 1e-05
    %v858 = vrsqrt.pop %v857
    %v861 = vunpack.c.l.s4 1966171168
    %v862 = vunpack.c.0.s8 %v861
    %v863 = vlaneseq
    %v864 = vshrl.u32 %v863, 7
    %v865 = vsub.s32 %v862, %v864
    %v866 = vrot.slane %v858, %v865
    %v867 = vcombine.high %v866, %v866
    %v869 = vunpack.c.l.s4 1966171168
    %v870 = vunpack.c.0.s8 %v869
    %v871 = vlaneseq
    %v872 = vshrl.u32 %v871, 7
    %v873 = vsub.s32 %v870, %v872
    %v874 = vrot.slane %v867, %v873
    %v876 = vmul.f32 %v856, %v874
    %v877 = vld [vmem:[%s4] sm:$0x1]
    %v878 = vmul.f32 %v849, %v876
    %v879 = vsub.f32 %v877, %v878
    %v881 = vlaneseq
    %v882 = vshrl.u32 %v881, 7
    %v883 = vsub.s32 0, %v882
    %v884 = vrot.slane %v876, %v883
    %v886 = vmul.f32 %v712, %v884
    %v887 = vmul.f32 %v713, %v884
    %v888 = vmul.f32 %v714, %v884
    %v889 = vmul.f32 %v715, %v884
    %v890 = vmul.f32 %v716, %v884
    %v892 = vlaneseq
    %v893 = vshrl.u32 %v892, 7
    %v894 = vsub.s32 0, %v893
    %v895 = vrot.slane %v879, %v894
    %v897 = vadd.f32 %v886, %v895
    %v898 = vadd.f32 %v887, %v895
    %v899 = vadd.f32 %v888, %v895
    %v900 = vadd.f32 %v889, %v895
    %v901 = vadd.f32 %v890, %v895
    %v902 = vmax.f32 %v897, 0.0
    %v903 = vmax.f32 %v898, 0.0
    %v904 = vmax.f32 %v899, 0.0
    %v905 = vmax.f32 %v900, 0.0
    %v906 = vmax.f32 %v901, 0.0
    %907 = vst [vmem:[#allocation3] sm:$0xf] 0
    %908 = vst [vmem:[#allocation3 + $0x4] sm:$0xf] 0
    %909 = vst [vmem:[#allocation3 + $0x8] sm:$0xf] 0
    %910 = vst [vmem:[#allocation3 + $0xc] sm:$0xf] 0
    %911 = vst [vmem:[#allocation3 + $0x10] sm:$0x3] 0
    %v912 = vpack.c.bf16 %v903, %v902
    %v914 = vunpack.c.l.b16 %v912
    %v915 = vunpack.c.h.b16 %v912
    %v916 = vpack.c.b16 %v914, %v914
    %v917 = vpack.c.b16 %v915, %v915
    %v919 = vshrl.u32 %v916, 16
    %v921 = vrot.slane %v919, 7
    %v922 = vshll.u32 %v916, 16
    %v924 = vor.u32 %v921, %v922
    %v925 = vrot.slane %v921, 4
    %v927 = vshrl.u32 %v917, 16
    %v929 = vrot.slane %v927, 7
    %v930 = vshll.u32 %v917, 16
    %v932 = vor.u32 %v929, %v930
    %v933 = vsel %vm166, %v925, %v932
    %v934 = vrot.slane %v929, 4
    %vm938 = vcmask 1043456
    %vm939 = vmand %vm938, %vm188
    %v940 = vld [vmem:[#allocation3] sm:$0xf]
    %v941 = vsel %vm939, %v924, %v940
    %942 = vst [vmem:[#allocation3] sm:$0xf] %v941
    %943 = vst [vmem:[#allocation3 + $0x4] sm:$0xf] %v933
    %vm944 = vcmask 1040384
    %vm945 = vmand %vm944, %vm164
    %v946 = vld [vmem:[#allocation3 + $0x8] sm:$0x1]
    %v947 = vsel %vm945, %v934, %v946
    %948 = vst [vmem:[#allocation3 + $0x8] sm:$0x1] %v947
    %v949 = vpack.c.bf16 %v905, %v904
    %v950 = vpack.c.bf16 %v906, %v906
    %v953 = vunpack.c.l.b16 %v949
    %v954 = vunpack.c.h.b16 %v949
    %v955 = vunpack.c.l.b16 %v950
    %v956 = vpack.c.b16 %v953, %v953
    %v957 = vpack.c.b16 %v954, %v954
    %v958 = vpack.c.b16 %v955, %v955
    %v960 = vshrl.u32 %v956, 16
    %v962 = vrot.slane %v960, 7
    %v963 = vshll.u32 %v956, 16
    %v965 = vor.u32 %v962, %v963
    %v966 = vrot.slane %v962, 4
    %v968 = vshrl.u32 %v957, 16
    %v970 = vrot.slane %v968, 7
    %v971 = vshll.u32 %v957, 16
    %v973 = vor.u32 %v970, %v971
    %v974 = vsel %vm166, %v966, %v973
    %v975 = vrot.slane %v970, 4
    %v977 = vshrl.u32 %v958, 16
    %v979 = vrot.slane %v977, 7
    %v980 = vshll.u32 %v958, 16
    %v982 = vor.u32 %v979, %v980
    %v983 = vsel %vm166, %v975, %v982
    %vm987 = vcmask 1043457
    %vm988 = vmand %vm987, %vm228
    %v989 = vld [vmem:[#allocation3 + $0x8] sm:$0xe]
    %v990 = vsel %vm988, %v965, %v989
    %991 = vst [vmem:[#allocation3 + $0x8] sm:$0xe] %v990
    %992 = vst [vmem:[#allocation3 + $0xc] sm:$0xf] %v974
    %vm993 = vcmask 1041408
    %vm994 = vmand %vm993, %vm202
    %v995 = vld [vmem:[#allocation3 + $0x10] sm:$0x3]
    %v996 = vsel %vm994, %v983, %v995
    %997 = vst [vmem:[#allocation3 + $0x10] sm:$0x3] %v996
    %v998 = vld [vmem:[#allocation3] sm:$0xf]
    %v999 = vld [vmem:[#allocation3 + $0x4] sm:$0xf]
    %v1000 = vld [vmem:[#allocation3 + $0x8] sm:$0xf]
    %v1001 = vld [vmem:[#allocation3 + $0xc] sm:$0xf]
    %v1002 = vld [vmem:[#allocation3 + $0x10] sm:$0x1]
    %v1003 = vld [vmem:[%s5] sm:$0xff]
    %v1004 = vld [vmem:[%s5 + $0x8] sm:$0xff]
    %v1005 = vld [vmem:[%s5 + $0x10] sm:$0xff]
    %v1006 = vld [vmem:[%s5 + $0x18] sm:$0xff]
    %v1007 = vld [vmem:[%s5 + $0x20] sm:$0xff]
    %v1008 = vld [vmem:[%s5 + $0x28] sm:$0xff]
    %v1009 = vld [vmem:[%s5 + $0x30] sm:$0xff]
    %v1010 = vld [vmem:[%s5 + $0x38] sm:$0xff]
    %v1011 = vld [vmem:[%s5 + $0x40] sm:$0xff]
    %v1012 = vld [vmem:[%s5 + $0x48] sm:$0xff]
    %v1013 = vld [vmem:[%s5 + $0x50] sm:$0xff]
    %v1014 = vld [vmem:[%s5 + $0x58] sm:$0xff]
    %v1015 = vld [vmem:[%s5 + $0x60] sm:$0xff]
    %v1016 = vld [vmem:[%s5 + $0x68] sm:$0xff]
    %v1017 = vld [vmem:[%s5 + $0x70] sm:$0xff]
    %v1018 = vld [vmem:[%s5 + $0x78] sm:$0xff]
    %v1019 = vld [vmem:[#allocation3 + $0x10] sm:$0x3]
    %s1020 = scalar_lea.vmem %s5, 128
    %v1021 = vld [vmem:[%s1020] sm:$0xff]
    %v1022 = vld [vmem:[%s1020 + $0x8] sm:$0xff]
    %v1023 = vld [vmem:[%s1020 + $0x10] sm:$0xff]
    %v1024 = vld [vmem:[%s1020 + $0x18] sm:$0xff]
    %v1025 = vld [vmem:[%s1020 + $0x20] sm:$0xff]
    %v1026 = vld [vmem:[%s1020 + $0x28] sm:$0xff]
    %v1027 = vld [vmem:[%s1020 + $0x30] sm:$0xff]
    %v1028 = vld [vmem:[%s1020 + $0x38] sm:$0xff]
    %v1029 = vld [vmem:[%s1020 + $0x40] sm:$0xff]
    %v1030 = vld [vmem:[%s1020 + $0x48] sm:$0xff]
    %v1031 = vld [vmem:[%s1020 + $0x50] sm:$0xff]
    %v1032 = vld [vmem:[%s1020 + $0x58] sm:$0xff]
    %v1033 = vld [vmem:[%s1020 + $0x60] sm:$0xff]
    %v1034 = vld [vmem:[%s1020 + $0x68] sm:$0xff]
    %v1035 = vld [vmem:[%s1020 + $0x70] sm:$0xff]
    %v1036 = vld [vmem:[%s1020 + $0x78] sm:$0xff]
    %v1042 = vunpack.c.l.b16 %v998
    %v1043 = vunpack.c.l.b16 %v999
    %v1044 = vunpack.c.l.b16 %v1000
    %v1045 = vunpack.c.l.b16 %v1001
    %v1046 = vunpack.c.l.b16 %v1019
    %v1047 = vpack.c.b16 %v1043, %v1042
    %v1048 = vpack.c.b16 %v1045, %v1044
    %v1049 = vpack.c.b16 %v1046, %v1046
    %v1051 = vshrl.u32 %v1047, 16
    %v1053 = vshll.u32 %v1047, 16
    %v1055 = vrot.slane %v1053, 1
    %v1056 = vor.u32 %v1051, %v1055
    %v1058 = vshll.u32 %v1048, 16
    %v1060 = vrot.slane %v1058, 1
    %v1061 = vsel %vm275, %v1056, %v1060
    %v1062 = vshrl.u32 %v1048, 16
    %v1064 = vor.u32 %v1062, %v1060
    %v1066 = vshll.u32 %v1049, 16
    %v1068 = vrot.slane %v1066, 1
    %v1069 = vsel %vm275, %v1064, %v1068
    %v1070 = vshrl.u32 %v1049, 16
    %v1072 = vor.u32 %v1070, %v1068
    %v1092 = vunpack.c.l.b16 %v1021
    %v1093 = vunpack.c.h.b16 %v1021
    %v1094 = vunpack.c.l.b16 %v1022
    %v1095 = vunpack.c.h.b16 %v1022
    %v1096 = vunpack.c.l.b16 %v1023
    %v1097 = vunpack.c.h.b16 %v1023
    %v1098 = vunpack.c.l.b16 %v1024
    %v1099 = vunpack.c.h.b16 %v1024
    %v1100 = vunpack.c.l.b16 %v1025
    %v1101 = vunpack.c.h.b16 %v1025
    %v1102 = vunpack.c.l.b16 %v1026
    %v1103 = vunpack.c.h.b16 %v1026
    %v1104 = vunpack.c.l.b16 %v1027
    %v1105 = vunpack.c.h.b16 %v1027
    %v1106 = vunpack.c.l.b16 %v1028
    %v1107 = vunpack.c.h.b16 %v1028
    %v1108 = vunpack.c.l.b16 %v1029
    %v1109 = vunpack.c.h.b16 %v1029
    %v1110 = vunpack.c.l.b16 %v1030
    %v1111 = vunpack.c.h.b16 %v1030
    %v1112 = vunpack.c.l.b16 %v1031
    %v1113 = vunpack.c.h.b16 %v1031
    %v1114 = vunpack.c.l.b16 %v1032
    %v1115 = vunpack.c.h.b16 %v1032
    %v1116 = vunpack.c.l.b16 %v1033
    %v1117 = vunpack.c.h.b16 %v1033
    %v1118 = vunpack.c.l.b16 %v1034
    %v1119 = vunpack.c.h.b16 %v1034
    %v1120 = vunpack.c.l.b16 %v1035
    %v1121 = vunpack.c.h.b16 %v1035
    %v1122 = vunpack.c.l.b16 %v1036
    %v1123 = vunpack.c.h.b16 %v1036
    %v1124 = vpack.c.b16 %v1094, %v1092
    %v1125 = vpack.c.b16 %v1095, %v1093
    %v1126 = vpack.c.b16 %v1098, %v1096
    %v1127 = vpack.c.b16 %v1099, %v1097
    %v1128 = vpack.c.b16 %v1102, %v1100
    %v1129 = vpack.c.b16 %v1103, %v1101
    %v1130 = vpack.c.b16 %v1106, %v1104
    %v1131 = vpack.c.b16 %v1107, %v1105
    %v1132 = vpack.c.b16 %v1110, %v1108
    %v1133 = vpack.c.b16 %v1111, %v1109
    %v1134 = vpack.c.b16 %v1114, %v1112
    %v1135 = vpack.c.b16 %v1115, %v1113
    %v1136 = vpack.c.b16 %v1118, %v1116
    %v1137 = vpack.c.b16 %v1119, %v1117
    %v1138 = vpack.c.b16 %v1122, %v1120
    %v1139 = vpack.c.b16 %v1123, %v1121
    %1156 = vmatprep.subr.bf16.mxu0 %v1125
    %1157 = vmatpush1.bf16.msra.mxu0 %v1124
    %1158 = vmatprep.subr.bf16.mxu0 %v1127
    %1159 = vmatpush1.bf16.msra.mxu0 %v1126
    %1160 = vmatprep.subr.bf16.mxu0 %v1129
    %1161 = vmatpush1.bf16.msra.mxu0 %v1128
    %1162 = vmatprep.subr.bf16.mxu0 %v1131
    %1163 = vmatpush1.bf16.msra.mxu0 %v1130
    %1164 = vmatprep.subr.bf16.mxu0 %v1133
    %1165 = vmatpush1.bf16.msra.mxu0 %v1132
    %1166 = vmatprep.subr.bf16.mxu0 %v1135
    %1167 = vmatpush1.bf16.msra.mxu0 %v1134
    %1168 = vmatprep.subr.bf16.mxu0 %v1137
    %1169 = vmatpush1.bf16.msra.mxu0 %v1136
    %1170 = vmatprep.subr.bf16.mxu0 %v1139
    %1171 = vmatpush1.bf16.msra.mxu0 %v1138
    %1172 = vmatprep.subr.bf16.mxu0 0
    %1173 = vmatpush1.bf16.msra.mxu0 0
    %1174 = vmatprep.subr.bf16.mxu0 0
    %1175 = vmatpush1.bf16.msra.mxu0 0
    %1176 = vmatprep.subr.bf16.mxu0 0
    %1177 = vmatpush1.bf16.msra.mxu0 0
    %1178 = vmatprep.subr.bf16.mxu0 0
    %1179 = vmatpush1.bf16.msra.mxu0 0
    %1180 = vmatprep.subr.bf16.mxu0 0
    %1181 = vmatpush1.bf16.msra.mxu0 0
    %1182 = vmatprep.subr.bf16.mxu0 0
    %1183 = vmatpush1.bf16.msra.mxu0 0
    %1184 = vmatprep.subr.bf16.mxu0 0
    %1185 = vmatpush1.bf16.msra.mxu0 0
    %1186 = vmatprep.subr.bf16.mxu0 0
    %1187 = vmatpush1.bf16.msra.mxu0 0
    %1188 = vmatprep.mubr.bf16.mxu0 0
    %1189 = vmatmul.mubr.bf16.gmra.mrb[0].mxu0 %v1061
    %v1190 = vpop.f32.mrb[0].mxu0
    %v1191 = vadd.f32 0.0, %v1190
    %v1192 = vpop.f32.mrb[0].mxu0
    %v1193 = vadd.f32 0.0, %v1192
    %v1194 = vpop.f32.mrb[0].mxu0
    %v1195 = vadd.f32 0.0, %v1194
    %v1196 = vpop.f32.mrb[0].mxu0
    %v1197 = vadd.f32 0.0, %v1196
    %1198 = vmatprep.mubr.bf16.mxu0 0
    %1199 = vmatmul.mubr.bf16.gmra.mrb[0].mxu0 %v1069
    %v1200 = vpop.f32.mrb[0].mxu0
    %v1201 = vadd.f32 0.0, %v1200
    %v1202 = vpop.f32.mrb[0].mxu0
    %v1203 = vadd.f32 0.0, %v1202
    %v1204 = vpop.f32.mrb[0].mxu0
    %v1205 = vadd.f32 0.0, %v1204
    %v1206 = vpop.f32.mrb[0].mxu0
    %v1207 = vadd.f32 0.0, %v1206
    %1208 = vmatprep.mubr.bf16.mxu0 0
    %1209 = vmatmul.mubr.bf16.gmra.mrb[0].mxu0 %v1072
    %v1210 = vpop.f32.mrb[0].mxu0
    %v1211 = vadd.f32 0.0, %v1210
    %v1212 = vpop.f32.mrb[0].mxu0
    %v1213 = vadd.f32 0.0, %v1212
    %v1214 = vpop.f32.mrb[0].mxu0
    %v1215 = vpop.f32.mrb[0].mxu0
    %1216 = vdwg.mxu0
    %v1218 = vunpack.c.l.b16 %v1002
    %v1219 = vpack.c.b16 %v1218, %v1218
    %v1239 = vunpack.c.l.b16 %v1003
    %v1240 = vunpack.c.h.b16 %v1003
    %v1241 = vunpack.c.l.b16 %v1004
    %v1242 = vunpack.c.h.b16 %v1004
    %v1243 = vunpack.c.l.b16 %v1005
    %v1244 = vunpack.c.h.b16 %v1005
    %v1245 = vunpack.c.l.b16 %v1006
    %v1246 = vunpack.c.h.b16 %v1006
    %v1247 = vunpack.c.l.b16 %v1007
    %v1248 = vunpack.c.h.b16 %v1007
    %v1249 = vunpack.c.l.b16 %v1008
    %v1250 = vunpack.c.h.b16 %v1008
    %v1251 = vunpack.c.l.b16 %v1009
    %v1252 = vunpack.c.h.b16 %v1009
    %v1253 = vunpack.c.l.b16 %v1010
    %v1254 = vunpack.c.h.b16 %v1010
    %v1255 = vunpack.c.l.b16 %v1011
    %v1256 = vunpack.c.h.b16 %v1011
    %v1257 = vunpack.c.l.b16 %v1012
    %v1258 = vunpack.c.h.b16 %v1012
    %v1259 = vunpack.c.l.b16 %v1013
    %v1260 = vunpack.c.h.b16 %v1013
    %v1261 = vunpack.c.l.b16 %v1014
    %v1262 = vunpack.c.h.b16 %v1014
    %v1263 = vunpack.c.l.b16 %v1015
    %v1264 = vunpack.c.h.b16 %v1015
    %v1265 = vunpack.c.l.b16 %v1016
    %v1266 = vunpack.c.h.b16 %v1016
    %v1267 = vunpack.c.l.b16 %v1017
    %v1268 = vunpack.c.h.b16 %v1017
    %v1269 = vunpack.c.l.b16 %v1018
    %v1270 = vunpack.c.h.b16 %v1018
    %v1271 = vpack.c.b16 %v1241, %v1239
    %v1272 = vpack.c.b16 %v1242, %v1240
    %v1273 = vpack.c.b16 %v1245, %v1243
    %v1274 = vpack.c.b16 %v1246, %v1244
    %v1275 = vpack.c.b16 %v1249, %v1247
    %v1276 = vpack.c.b16 %v1250, %v1248
    %v1277 = vpack.c.b16 %v1253, %v1251
    %v1278 = vpack.c.b16 %v1254, %v1252
    %v1279 = vpack.c.b16 %v1257, %v1255
    %v1280 = vpack.c.b16 %v1258, %v1256
    %v1281 = vpack.c.b16 %v1261, %v1259
    %v1282 = vpack.c.b16 %v1262, %v1260
    %v1283 = vpack.c.b16 %v1265, %v1263
    %v1284 = vpack.c.b16 %v1266, %v1264
    %v1285 = vpack.c.b16 %v1269, %v1267
    %v1286 = vpack.c.b16 %v1270, %v1268
    %1303 = vmatprep.subr.bf16.mxu0 %v1272
    %1304 = vmatpush1.bf16.msra.mxu0 %v1271
    %1305 = vmatprep.subr.bf16.mxu0 %v1274
    %1306 = vmatpush1.bf16.msra.mxu0 %v1273
    %1307 = vmatprep.subr.bf16.mxu0 %v1276
    %1308 = vmatpush1.bf16.msra.mxu0 %v1275
    %1309 = vmatprep.subr.bf16.mxu0 %v1278
    %1310 = vmatpush1.bf16.msra.mxu0 %v1277
    %1311 = vmatprep.subr.bf16.mxu0 %v1280
    %1312 = vmatpush1.bf16.msra.mxu0 %v1279
    %1313 = vmatprep.subr.bf16.mxu0 %v1282
    %1314 = vmatpush1.bf16.msra.mxu0 %v1281
    %1315 = vmatprep.subr.bf16.mxu0 %v1284
    %1316 = vmatpush1.bf16.msra.mxu0 %v1283
    %1317 = vmatprep.subr.bf16.mxu0 %v1286
    %1318 = vmatpush1.bf16.msra.mxu0 %v1285
    %1319 = vmatprep.subr.bf16.mxu0 0
    %1320 = vmatpush1.bf16.msra.mxu0 0
    %1321 = vmatprep.subr.bf16.mxu0 0
    %1322 = vmatpush1.bf16.msra.mxu0 0
    %1323 = vmatprep.subr.bf16.mxu0 0
    %1324 = vmatpush1.bf16.msra.mxu0 0
    %1325 = vmatprep.subr.bf16.mxu0 0
    %1326 = vmatpush1.bf16.msra.mxu0 0
    %1327 = vmatprep.subr.bf16.mxu0 0
    %1328 = vmatpush1.bf16.msra.mxu0 0
    %1329 = vmatprep.subr.bf16.mxu0 0
    %1330 = vmatpush1.bf16.msra.mxu0 0
    %1331 = vmatprep.subr.bf16.mxu0 0
    %1332 = vmatpush1.bf16.msra.mxu0 0
    %1333 = vmatprep.subr.bf16.mxu0 0
    %1334 = vmatpush1.bf16.msra.mxu0 0
    %1335 = vmatprep.mubr.bf16.mxu0 0
    %1336 = vmatmul.mubr.bf16.gmra.mrb[0].mxu0 %v1047
    %v1337 = vpop.f32.mrb[0].mxu0
    %v1338 = vadd.f32 %v1191, %v1337
    %v1339 = vpop.f32.mrb[0].mxu0
    %v1340 = vadd.f32 %v1193, %v1339
    %v1341 = vpop.f32.mrb[0].mxu0
    %v1342 = vadd.f32 %v1195, %v1341
    %v1343 = vpop.f32.mrb[0].mxu0
    %v1344 = vadd.f32 %v1197, %v1343
    %1345 = vmatprep.mubr.bf16.mxu0 0
    %1346 = vmatmul.mubr.bf16.gmra.mrb[0].mxu0 %v1048
    %v1347 = vpop.f32.mrb[0].mxu0
    %v1348 = vadd.f32 %v1201, %v1347
    %v1349 = vpop.f32.mrb[0].mxu0
    %v1350 = vadd.f32 %v1203, %v1349
    %v1351 = vpop.f32.mrb[0].mxu0
    %v1352 = vadd.f32 %v1205, %v1351
    %v1353 = vpop.f32.mrb[0].mxu0
    %v1354 = vadd.f32 %v1207, %v1353
    %1355 = vmatprep.mubr.bf16.mxu0 0
    %1356 = vmatmul.mubr.bf16.gmra.mrb[0].mxu0 %v1219
    %v1357 = vpop.f32.mrb[0].mxu0
    %v1358 = vadd.f32 %v1211, %v1357
    %v1359 = vpop.f32.mrb[0].mxu0
    %v1360 = vadd.f32 %v1213, %v1359
    %v1361 = vpop.f32.mrb[0].mxu0
    %v1362 = vpop.f32.mrb[0].mxu0
    %1363 = vdwg.mxu0
    %v1364 = vld [vmem:[#allocation3] sm:$0xe]
    %s1365 = scalar_lea.vmem %s5, 256
    %v1366 = vld [vmem:[%s1365] sm:$0xff]
    %v1367 = vld [vmem:[%s1365 + $0x8] sm:$0xff]
    %v1368 = vld [vmem:[%s1365 + $0x10] sm:$0xff]
    %v1369 = vld [vmem:[%s1365 + $0x18] sm:$0xff]
    %v1370 = vld [vmem:[%s1365 + $0x20] sm:$0xff]
    %v1371 = vld [vmem:[%s1365 + $0x28] sm:$0xff]
    %v1372 = vld [vmem:[%s1365 + $0x30] sm:$0xff]
    %v1373 = vld [vmem:[%s1365 + $0x38] sm:$0xff]
    %v1374 = vld [vmem:[%s1365 + $0x40] sm:$0xff]
    %v1375 = vld [vmem:[%s1365 + $0x48] sm:$0xff]
    %v1376 = vld [vmem:[%s1365 + $0x50] sm:$0xff]
    %v1377 = vld [vmem:[%s1365 + $0x58] sm:$0xff]
    %v1378 = vld [vmem:[%s1365 + $0x60] sm:$0xff]
    %v1379 = vld [vmem:[%s1365 + $0x68] sm:$0xff]
    %v1380 = vld [vmem:[%s1365 + $0x70] sm:$0xff]
    %v1381 = vld [vmem:[%s1365 + $0x78] sm:$0xff]
    %v1383 = vunpack.c.l.b16 %v1364
    %v1384 = vpack.c.b16 %v1043, %v1383
    %v1385 = vrot.slane %v1384, 1
    %v1386 = vrot.slane %v1048, 1
    %v1387 = vsel %vm534, %v1385, %v1386
    %v1388 = vrot.slane %v1049, 1
    %v1389 = vsel %vm534, %v1386, %v1388
    %v1409 = vunpack.c.l.b16 %v1366
    %v1410 = vunpack.c.h.b16 %v1366
    %v1411 = vunpack.c.l.b16 %v1367
    %v1412 = vunpack.c.h.b16 %v1367
    %v1413 = vunpack.c.l.b16 %v1368
    %v1414 = vunpack.c.h.b16 %v1368
    %v1415 = vunpack.c.l.b16 %v1369
    %v1416 = vunpack.c.h.b16 %v1369
    %v1417 = vunpack.c.l.b16 %v1370
    %v1418 = vunpack.c.h.b16 %v1370
    %v1419 = vunpack.c.l.b16 %v1371
    %v1420 = vunpack.c.h.b16 %v1371
    %v1421 = vunpack.c.l.b16 %v1372
    %v1422 = vunpack.c.h.b16 %v1372
    %v1423 = vunpack.c.l.b16 %v1373
    %v1424 = vunpack.c.h.b16 %v1373
    %v1425 = vunpack.c.l.b16 %v1374
    %v1426 = vunpack.c.h.b16 %v1374
    %v1427 = vunpack.c.l.b16 %v1375
    %v1428 = vunpack.c.h.b16 %v1375
    %v1429 = vunpack.c.l.b16 %v1376
    %v1430 = vunpack.c.h.b16 %v1376
    %v1431 = vunpack.c.l.b16 %v1377
    %v1432 = vunpack.c.h.b16 %v1377
    %v1433 = vunpack.c.l.b16 %v1378
    %v1434 = vunpack.c.h.b16 %v1378
    %v1435 = vunpack.c.l.b16 %v1379
    %v1436 = vunpack.c.h.b16 %v1379
    %v1437 = vunpack.c.l.b16 %v1380
    %v1438 = vunpack.c.h.b16 %v1380
    %v1439 = vunpack.c.l.b16 %v1381
    %v1440 = vunpack.c.h.b16 %v1381
    %v1441 = vpack.c.b16 %v1411, %v1409
    %v1442 = vpack.c.b16 %v1412, %v1410
    %v1443 = vpack.c.b16 %v1415, %v1413
    %v1444 = vpack.c.b16 %v1416, %v1414
    %v1445 = vpack.c.b16 %v1419, %v1417
    %v1446 = vpack.c.b16 %v1420, %v1418
    %v1447 = vpack.c.b16 %v1423, %v1421
    %v1448 = vpack.c.b16 %v1424, %v1422
    %v1449 = vpack.c.b16 %v1427, %v1425
    %v1450 = vpack.c.b16 %v1428, %v1426
    %v1451 = vpack.c.b16 %v1431, %v1429
    %v1452 = vpack.c.b16 %v1432, %v1430
    %v1453 = vpack.c.b16 %v1435, %v1433
    %v1454 = vpack.c.b16 %v1436, %v1434
    %v1455 = vpack.c.b16 %v1439, %v1437
    %v1456 = vpack.c.b16 %v1440, %v1438
    %1473 = vmatprep.subr.bf16.mxu0 %v1442
    %1474 = vmatpush1.bf16.msra.mxu0 %v1441
    %1475 = vmatprep.subr.bf16.mxu0 %v1444
    %1476 = vmatpush1.bf16.msra.mxu0 %v1443
    %1477 = vmatprep.subr.bf16.mxu0 %v1446
    %1478 = vmatpush1.bf16.msra.mxu0 %v1445
    %1479 = vmatprep.subr.bf16.mxu0 %v1448
    %1480 = vmatpush1.bf16.msra.mxu0 %v1447
    %1481 = vmatprep.subr.bf16.mxu0 %v1450
    %1482 = vmatpush1.bf16.msra.mxu0 %v1449
    %1483 = vmatprep.subr.bf16.mxu0 %v1452
    %1484 = vmatpush1.bf16.msra.mxu0 %v1451
    %1485 = vmatprep.subr.bf16.mxu0 %v1454
    %1486 = vmatpush1.bf16.msra.mxu0 %v1453
    %1487 = vmatprep.subr.bf16.mxu0 %v1456
    %1488 = vmatpush1.bf16.msra.mxu0 %v1455
    %1489 = vmatprep.subr.bf16.mxu0 0
    %1490 = vmatpush1.bf16.msra.mxu0 0
    %1491 = vmatprep.subr.bf16.mxu0 0
    %1492 = vmatpush1.bf16.msra.mxu0 0
    %1493 = vmatprep.subr.bf16.mxu0 0
    %1494 = vmatpush1.bf16.msra.mxu0 0
    %1495 = vmatprep.subr.bf16.mxu0 0
    %1496 = vmatpush1.bf16.msra.mxu0 0
    %1497 = vmatprep.subr.bf16.mxu0 0
    %1498 = vmatpush1.bf16.msra.mxu0 0
    %1499 = vmatprep.subr.bf16.mxu0 0
    %1500 = vmatpush1.bf16.msra.mxu0 0
    %1501 = vmatprep.subr.bf16.mxu0 0
    %1502 = vmatpush1.bf16.msra.mxu0 0
    %1503 = vmatprep.subr.bf16.mxu0 0
    %1504 = vmatpush1.bf16.msra.mxu0 0
    %1505 = vmatprep.mubr.bf16.mxu0 0
    %1506 = vmatmul.mubr.bf16.gmra.mrb[0].mxu0 %v1387
    %v1507 = vpop.f32.mrb[0].mxu0
    %v1508 = vadd.f32 0.0, %v1507
    %v1509 = vpop.f32.mrb[0].mxu0
    %v1510 = vadd.f32 0.0, %v1509
    %v1511 = vpop.f32.mrb[0].mxu0
    %v1512 = vadd.f32 0.0, %v1511
    %v1513 = vpop.f32.mrb[0].mxu0
    %v1514 = vadd.f32 0.0, %v1513
    %1515 = vmatprep.mubr.bf16.mxu0 0
    %1516 = vmatmul.mubr.bf16.gmra.mrb[0].mxu0 %v1389
    %v1517 = vpop.f32.mrb[0].mxu0
    %v1518 = vadd.f32 0.0, %v1517
    %v1519 = vpop.f32.mrb[0].mxu0
    %v1520 = vadd.f32 0.0, %v1519
    %v1521 = vpop.f32.mrb[0].mxu0
    %v1522 = vadd.f32 0.0, %v1521
    %v1523 = vpop.f32.mrb[0].mxu0
    %v1524 = vadd.f32 0.0, %v1523
    %1525 = vmatprep.mubr.bf16.mxu0 0
    %1526 = vmatmul.mubr.bf16.gmra.mrb[0].mxu0 %v1388
    %v1527 = vpop.f32.mrb[0].mxu0
    %v1528 = vadd.f32 0.0, %v1527
    %v1529 = vpop.f32.mrb[0].mxu0
    %v1530 = vadd.f32 0.0, %v1529
    %v1531 = vpop.f32.mrb[0].mxu0
    %v1532 = vpop.f32.mrb[0].mxu0
    %1533 = vdwg.mxu0
    %v1534 = vadd.f32 %v1338, %v1508
    %v1535 = vadd.f32 %v1340, %v1510
    %v1536 = vadd.f32 %v1342, %v1512
    %v1537 = vadd.f32 %v1344, %v1514
    %v1538 = vadd.f32 %v1348, %v1518
    %v1539 = vadd.f32 %v1350, %v1520
    %v1540 = vadd.f32 %v1352, %v1522
    %v1541 = vadd.f32 %v1354, %v1524
    %v1542 = vadd.f32 %v1358, %v1528
    %v1543 = vadd.f32 %v1360, %v1530
    %v1544 = vld [vmem:[%s6] sm:$0x3]
    %v1546 = vlaneseq
    %v1547 = vshrl.u32 %v1546, 7
    %v1548 = vsub.s32 0, %v1547
    %v1549 = vrot.slane %v1544, %v1548
    %v1550 = vlaneseq
    %v1551 = vshrl.u32 %v1550, 7
    %v1552 = vsub.s32 1, %v1551
    %v1553 = vrot.slane %v1544, %v1552
    %v1556 = vadd.f32 %v1534, %v1549
    %v1557 = vadd.f32 %v1535, %v1553
    %v1558 = vadd.f32 %v1536, %v1549
    %v1559 = vadd.f32 %v1537, %v1553
    %v1560 = vadd.f32 %v1538, %v1549
    %v1561 = vadd.f32 %v1539, %v1553
    %v1562 = vadd.f32 %v1540, %v1549
    %v1563 = vadd.f32 %v1541, %v1553
    %v1564 = vadd.f32 %v1542, %v1549
    %v1565 = vadd.f32 %v1543, %v1553
    %v1566 = vxor.u32 %v1557, 2147483648
    %v1567 = vxor.u32 %v1559, 2147483648
    %v1568 = vxor.u32 %v1561, 2147483648
    %v1569 = vxor.u32 %v1563, 2147483648
    %v1570 = vxor.u32 %v1565, 2147483648
    %v1571 = vmul.f32 %v1566, 1.442695
    %v1572 = vpow.pop %v1571
    %v1573 = vmul.f32 %v1567, 1.442695
    %v1574 = vpow.pop %v1573
    %v1575 = vmul.f32 %v1568, 1.442695
    %v1576 = vpow.pop %v1575
    %v1577 = vmul.f32 %v1569, 1.442695
    %v1578 = vpow.pop %v1577
    %v1579 = vmul.f32 %v1570, 1.442695
    %v1580 = vpow.pop %v1579
    %v1581 = vadd.f32 %v1572, 1.0
    %v1582 = vadd.f32 %v1574, 1.0
    %v1583 = vadd.f32 %v1576, 1.0
    %v1584 = vadd.f32 %v1578, 1.0
    %v1585 = vadd.f32 %v1580, 1.0
    %v1586 = vrcp.pop %v1581
    %v1587 = vmul.f32 1.0, %v1586
    %v1588 = vrcp.pop %v1582
    %v1589 = vmul.f32 1.0, %v1588
    %v1590 = vrcp.pop %v1583
    %v1591 = vmul.f32 1.0, %v1590
    %v1592 = vrcp.pop %v1584
    %v1593 = vmul.f32 1.0, %v1592
    %v1594 = vrcp.pop %v1585
    %v1595 = vmul.f32 1.0, %v1594
    %v1596 = vmul.f32 %v1556, %v1587
    %v1597 = vmul.f32 %v1558, %v1589
    %v1598 = vmul.f32 %v1560, %v1591
    %v1599 = vmul.f32 %v1562, %v1593
    %v1600 = vmul.f32 %v1564, %v1595
    %v1601 = vsel %vm722, %v1596, 0.0
    %v1602 = vsel %vm723, %v1597, 0.0
    %v1603 = vsel %vm724, %v1598, 0.0
    %v1604 = vsel %vm725, %v1599, 0.0
    %v1605 = vsel %vm726, %v1600, 0.0
    %v1606 = vadd.f32 %v1601, %v1602
    %v1607 = vadd.f32 %v1606, %v1603
    %v1608 = vadd.f32 %v1607, %v1604
    %v1609 = vsel %vm735, %v1605, 0.0
    %v1610 = vadd.f32 %v1608, %v1609
    %v1611 = vrot.slane %v1610, 4
    %v1612 = vadd.f32 %v1610, %v1611
    %v1613 = vrot.slane %v1612, 2
    %v1614 = vadd.f32 %v1612, %v1613
    %v1615 = vrot.slane %v1614, 1
    %v1616 = vadd.f32 %v1614, %v1615
    %v1617 = vmul.f32 %v1601, %v1601
    %v1618 = vmul.f32 %v1602, %v1602
    %v1619 = vmul.f32 %v1603, %v1603
    %v1620 = vmul.f32 %v1604, %v1604
    %v1621 = vmul.f32 %v1605, %v1605
    %v1622 = vadd.f32 %v1617, %v1618
    %v1623 = vadd.f32 %v1622, %v1619
    %v1624 = vadd.f32 %v1623, %v1620
    %v1625 = vsel %vm735, %v1621, 0.0
    %v1626 = vadd.f32 %v1624, %v1625
    %v1627 = vrot.slane %v1626, 4
    %v1628 = vadd.f32 %v1626, %v1627
    %v1629 = vrot.slane %v1628, 2
    %v1630 = vadd.f32 %v1628, %v1629
    %v1631 = vrot.slane %v1630, 1
    %v1632 = vadd.f32 %v1630, %v1631
    %v1633 = vsel %vm760, %v1616, %v1632
    %v1634 = vld [vmem:[#allocation6] sm:$0xff]
    %v1635 = vld [vmem:[#allocation6 + $0x8] sm:$0xff]
    %v1636 = vld [vmem:[#allocation6 + $0x10] sm:$0xff]
    %v1637 = vld [vmem:[#allocation6 + $0x18] sm:$0xff]
    %v1638 = vld [vmem:[#allocation6 + $0x20] sm:$0xff]
    %v1639 = vld [vmem:[#allocation6 + $0x28] sm:$0xff]
    %v1640 = vld [vmem:[#allocation6 + $0x30] sm:$0xff]
    %v1641 = vld [vmem:[#allocation6 + $0x38] sm:$0xff]
    %v1642 = vld [vmem:[#allocation6 + $0x40] sm:$0xff]
    %v1643 = vld [vmem:[#allocation6 + $0x48] sm:$0xff]
    %v1644 = vld [vmem:[#allocation6 + $0x50] sm:$0xff]
    %v1645 = vld [vmem:[#allocation6 + $0x58] sm:$0xff]
    %v1646 = vld [vmem:[#allocation6 + $0x60] sm:$0xff]
    %v1647 = vld [vmem:[#allocation6 + $0x68] sm:$0xff]
    %v1648 = vld [vmem:[#allocation6 + $0x70] sm:$0xff]
    %v1649 = vld [vmem:[#allocation6 + $0x78] sm:$0xff]
    %1650 = vmatprep.subr.mxu0 0.0
    %1651 = vmatpush1.msra.mxu0 %v1634
    %1652 = vmatprep.subr.mxu0 0.0
    %1653 = vmatpush1.msra.mxu0 %v1635
    %1654 = vmatprep.subr.mxu0 0.0
    %1655 = vmatpush1.msra.mxu0 %v1636
    %1656 = vmatprep.subr.mxu0 0.0
    %1657 = vmatpush1.msra.mxu0 %v1637
    %1658 = vmatprep.subr.mxu0 0.0
    %1659 = vmatpush1.msra.mxu0 %v1638
    %1660 = vmatprep.subr.mxu0 0.0
    %1661 = vmatpush1.msra.mxu0 %v1639
    %1662 = vmatprep.subr.mxu0 0.0
    %1663 = vmatpush1.msra.mxu0 %v1640
    %1664 = vmatprep.subr.mxu0 0.0
    %1665 = vmatpush1.msra.mxu0 %v1641
    %1666 = vmatprep.subr.mxu0 0.0
    %1667 = vmatpush1.msra.mxu0 %v1642
    %1668 = vmatprep.subr.mxu0 0.0
    %1669 = vmatpush1.msra.mxu0 %v1643
    %1670 = vmatprep.subr.mxu0 0.0
    %1671 = vmatpush1.msra.mxu0 %v1644
    %1672 = vmatprep.subr.mxu0 0.0
    %1673 = vmatpush1.msra.mxu0 %v1645
    %1674 = vmatprep.subr.mxu0 0.0
    %1675 = vmatpush1.msra.mxu0 %v1646
    %1676 = vmatprep.subr.mxu0 0.0
    %1677 = vmatpush1.msra.mxu0 %v1647
    %1678 = vmatprep.subr.mxu0 0.0
    %1679 = vmatpush1.msra.mxu0 %v1648
    %1680 = vmatprep.subr.mxu0 0.0
    %1681 = vmatpush1.msra.mxu0 %v1649
    %1682 = vmatprep.subr.mxu0 0.0
    %1683 = vmatpush1.msra.mxu0 0.0
    %1684 = vmatprep.subr.mxu0 0.0
    %1685 = vmatpush1.msra.mxu0 0.0
    %1686 = vmatprep.subr.mxu0 0.0
    %1687 = vmatpush1.msra.mxu0 0.0
    %1688 = vmatprep.subr.mxu0 0.0
    %1689 = vmatpush1.msra.mxu0 0.0
    %1690 = vmatprep.subr.mxu0 0.0
    %1691 = vmatpush1.msra.mxu0 0.0
    %1692 = vmatprep.subr.mxu0 0.0
    %1693 = vmatpush1.msra.mxu0 0.0
    %1694 = vmatprep.subr.mxu0 0.0
    %1695 = vmatpush1.msra.mxu0 0.0
    %1696 = vmatprep.subr.mxu0 0.0
    %1697 = vmatpush1.msra.mxu0 0.0
    %1698 = vmatprep.subr.mxu0 0.0
    %1699 = vmatpush1.msra.mxu0 0.0
    %1700 = vmatprep.subr.mxu0 0.0
    %1701 = vmatpush1.msra.mxu0 0.0
    %1702 = vmatprep.subr.mxu0 0.0
    %1703 = vmatpush1.msra.mxu0 0.0
    %1704 = vmatprep.subr.mxu0 0.0
    %1705 = vmatpush1.msra.mxu0 0.0
    %1706 = vmatprep.subr.mxu0 0.0
    %1707 = vmatpush1.msra.mxu0 0.0
    %1708 = vmatprep.subr.mxu0 0.0
    %1709 = vmatpush1.msra.mxu0 0.0
    %1710 = vmatprep.subr.mxu0 0.0
    %1711 = vmatpush1.msra.mxu0 0.0
    %1712 = vmatprep.subr.mxu0 0.0
    %1713 = vmatpush1.msra.mxu0 0.0
    %1714 = vmatprep.mubr.f32.mxu0 0.0
    %1715 = vmatmul.mubr.f32.gmra.mrb[0].mxu0 %v1633
    %v1716 = vpop.f32.mrb[0].mxu0
    %v1717 = vadd.f32 0.0, %v1716
    %v1718 = vpop.f32.mrb[0].mxu0
    %1719 = vdwg.mxu0
    %v1720 = vmul.f32 %v1717, %v848
    %v1721 = vmul.f32 %v1720, %v1720
    %v1723 = vrot.slane %v1721, 7
    %v1725 = vsub.f32 %v1720, %v1723
    %v1726 = vmax.f32 %v1725, 0.0
    %v1727 = vld [vmem:[%s7] sm:$0x1]
    %v1728 = vadd.f32 %v1726, 1e-05
    %v1729 = vrsqrt.pop %v1728
    %v1732 = vunpack.c.l.s4 1966171168
    %v1733 = vunpack.c.0.s8 %v1732
    %v1734 = vlaneseq
    %v1735 = vshrl.u32 %v1734, 7
    %v1736 = vsub.s32 %v1733, %v1735
    %v1737 = vrot.slane %v1729, %v1736
    %v1738 = vcombine.high %v1737, %v1737
    %v1740 = vunpack.c.l.s4 1966171168
    %v1741 = vunpack.c.0.s8 %v1740
    %v1742 = vlaneseq
    %v1743 = vshrl.u32 %v1742, 7
    %v1744 = vsub.s32 %v1741, %v1743
    %v1745 = vrot.slane %v1738, %v1744
    %v1747 = vmul.f32 %v1727, %v1745
    %v1748 = vld [vmem:[%s8] sm:$0x1]
    %v1749 = vmul.f32 %v1720, %v1747
    %v1750 = vsub.f32 %v1748, %v1749
    %v1752 = vlaneseq
    %v1753 = vshrl.u32 %v1752, 7
    %v1754 = vsub.s32 0, %v1753
    %v1755 = vrot.slane %v1747, %v1754
    %v1757 = vmul.f32 %v1596, %v1755
    %v1758 = vmul.f32 %v1597, %v1755
    %v1759 = vmul.f32 %v1598, %v1755
    %v1760 = vmul.f32 %v1599, %v1755
    %v1761 = vmul.f32 %v1600, %v1755
    %v1763 = vlaneseq
    %v1764 = vshrl.u32 %v1763, 7
    %v1765 = vsub.s32 0, %v1764
    %v1766 = vrot.slane %v1750, %v1765
    %v1768 = vadd.f32 %v1757, %v1766
    %v1769 = vadd.f32 %v1758, %v1766
    %v1770 = vadd.f32 %v1759, %v1766
    %v1771 = vadd.f32 %v1760, %v1766
    %v1772 = vadd.f32 %v1761, %v1766
    %v1773 = vmax.f32 %v1768, 0.0
    %v1774 = vmax.f32 %v1769, 0.0
    %v1775 = vmax.f32 %v1770, 0.0
    %v1776 = vmax.f32 %v1771, 0.0
    %v1777 = vmax.f32 %v1772, 0.0
    %1778 = vst [vmem:[%s10] sm:$0xff] %v1773
    %1779 = vst [vmem:[%s10 + $0x8] sm:$0xff] %v1774
    %s1780 = scalar_lea.vmem %s10, 16
    %1781 = vst [vmem:[%s1780 - $0x2] sm:$0xfc] %v1775
    %1782 = vst [vmem:[%s1780 + $0x6] sm:$0xff] %v1776
    %1783 = vst [vmem:[%s1780 + $0xe] sm:$0x3] %v1777
    // Predicated region
    $region50: #{gated_double_conv.1} parent=1 // pred_check
      _
    $region51: #{gated_double_conv.1} parent=1 // pred_check_branch
      %1785 = sbr.rel (0) target = $region53
    $region52: #{gated_double_conv.1} parent=1 // pred_region
      _
    $region53: #{gated_double_conv.1} parent=1 // pred_fallthru
      _
    // Predicated region
    $region54: #{gated_double_conv.1} parent=1 // pred_check
      _
    $region55: #{gated_double_conv.1} parent=1 // pred_check_branch
      %1787 = sbr.rel (0) target = $region57
    $region56: #{gated_double_conv.1} parent=1 // pred_region
      _
    $region57: #{gated_double_conv.1} parent=1 // pred_fallthru
      _
    %1788 = vsyncpa [#allocation5], 1
    %1789 = vsyncpa [#allocation7], 1

</llo_original>
